<compile_context>
chip_gen: v6e
topology: v6e:2x2x1
jax: 0.10.0
libtpu: 0.0.40
codegen_flags: <defaults>
</compile_context>

<pallas_src>
import functools

import jax
import jax.numpy as jnp
from jax.experimental import pallas as pl
from jax.experimental.pallas import tpu as pltpu

DIM_IN = 1024
DIM_H1 = 512
DIM_H2 = 256
DIM_Z = 3
DIM_OUT = 2 * DIM_Z
BN_EPS = 1e-5
TILE_B = 1024                          # max batch tile (review: 512-1024); capped per call
VMEM_LIMIT_BYTES = 48 * 1024 * 1024    # v5e default scoped VMEM is only 16 MiB


def _softplus(x):
    # numerically stable softplus: max(x,0) + log1p(exp(-|x|))
    return jnp.maximum(x, 0.0) + jnp.log1p(jnp.exp(-jnp.abs(x)))


def encoder_kernel(x_ref, w1_ref, b1_ref, w2_ref, b2_ref, w3_ref, b3_ref, o_ref):
    # ---- fc1 (+ folded bn1) + relu : bf16 MXU matmul, f32 accumulation ----
    x = x_ref[...].astype(jnp.bfloat16)     # no-op when the producer already wrote bf16
    h = jnp.dot(x, w1_ref[...], preferred_element_type=jnp.float32) + b1_ref[...]
    h = jnp.maximum(h, 0.0)

    # ---- (dropout = identity in eval) fc2 (+ folded bn2) + relu ----
    h = jnp.dot(h.astype(jnp.bfloat16), w2_ref[...],
                preferred_element_type=jnp.float32) + b2_ref[...]
    h = jnp.maximum(h, 0.0)

    # ---- fc3 as a single 256 -> 2*dim_z matmul; softplus only on variance half ----
    o = jnp.dot(h.astype(jnp.bfloat16), w3_ref[...],
                preferred_element_type=jnp.float32) + b3_ref[...]
    col = jax.lax.broadcasted_iota(jnp.int32, o.shape, 1)
    o_ref[...] = jnp.where(col < DIM_Z, o, _softplus(o) + 1e-8)


def _round_up_to(n, m):
    return ((n + m - 1) // m) * m


def _pick_tile(B, tile_b):
    """Batch tile: multiple of 8, clamped to B, and capped so the grid keeps >=2 steps."""
    tile_b = max(8, _round_up_to(int(tile_b), 8))
    tb = min(tile_b, B)
    if B > 8:
        # Keep at least 2 grid steps so the "parallel" batch axis can shard across the
        # two TensorCores on megacore parts (v7x). One step would idle half the chip.
        tb = min(tb, _round_up_to(pl.cdiv(B, 2), 8))
    return tb


@functools.partial(jax.jit, static_argnames=("tile_b",))
def encoder_forward(x, params, *, tile_b=TILE_B):
    B = x.shape[0]
    tb = _pick_tile(B, tile_b)
    grid = (pl.cdiv(B, tb),)

    def resident(shape):
        # Constant index_map -> parameter block is fetched once and stays VMEM-resident
        # across all grid steps (no re-DMA).
        return pl.BlockSpec(shape, lambda i: (0, 0))

    # Scheduling hint for XLA around the custom call (free; helps overlap in larger models).
    flops = 2 * B * (DIM_IN * DIM_H1 + DIM_H1 * DIM_H2 + DIM_H2 * DIM_OUT)
    weight_bytes = (2 * (DIM_IN * DIM_H1 + DIM_H1 * DIM_H2 + DIM_H2 * DIM_OUT)
                    + 4 * (DIM_H1 + DIM_H2 + DIM_OUT))
    bytes_accessed = B * DIM_IN * x.dtype.itemsize + weight_bytes + B * DIM_OUT * 4
    transcendentals = 2 * B * DIM_Z

    o = pl.pallas_call(
        encoder_kernel,
        out_shape=jax.ShapeDtypeStruct((B, DIM_OUT), jnp.float32),
        grid=grid,
        in_specs=[
            pl.BlockSpec((tb, DIM_IN), lambda i: (i, 0)),       # x: tiled over batch
            resident((DIM_IN, DIM_H1)), resident((1, DIM_H1)),  # fc1 (bn1 folded)
            resident((DIM_H1, DIM_H2)), resident((1, DIM_H2)),  # fc2 (bn2 folded)
            resident((DIM_H2, DIM_OUT)), resident((1, DIM_OUT)),  # fc3 merged heads
        ],
        out_specs=pl.BlockSpec((tb, DIM_OUT), lambda i: (i, 0)),
        compiler_params=pltpu.CompilerParams(
            dimension_semantics=("parallel",),
            vmem_limit_bytes=VMEM_LIMIT_BYTES),
        cost_estimate=pl.CostEstimate(
            flops=flops,
            transcendentals=transcendentals,
            bytes_accessed=bytes_accessed),
    )(x, params["w1"], params["b1"], params["w2"], params["b2"],
      params["w3"], params["b3"])

    return o[:, :DIM_Z], o[:, DIM_Z:]


# ---------------------------------------------------------------------------
# Parameter construction (mimics the PyTorch module) + one-time prep (BN fold,
# bf16 cast).  Prep runs once at init, NOT per call.
# ---------------------------------------------------------------------------
def make_raw_params(key):
    ks = jax.random.split(key, 14)

    def lin(kw, kb, fan_in, fan_out):
        bound = 1.0 / jnp.sqrt(fan_in)
        w = jax.random.uniform(kw, (fan_in, fan_out), jnp.float32, -bound, bound)
        b = jax.random.uniform(kb, (1, fan_out), jnp.float32, -bound, bound)
        return w, b

    w1, b1 = lin(ks[0], ks[1], DIM_IN, DIM_H1)
    w2, b2 = lin(ks[2], ks[3], DIM_H1, DIM_H2)
    w3, b3 = lin(ks[4], ks[5], DIM_H2, DIM_OUT)

    # BatchNorm1d affine params + running stats (non-trivial, deterministic)
    g1 = 1.0 + 0.1 * jax.random.normal(ks[6], (1, DIM_H1), jnp.float32)
    be1 = 0.1 * jax.random.normal(ks[7], (1, DIM_H1), jnp.float32)
    rm1 = 0.1 * jax.random.normal(ks[8], (1, DIM_H1), jnp.float32)
    rv1 = 0.5 + jax.random.uniform(ks[9], (1, DIM_H1), jnp.float32)

    g2 = 1.0 + 0.1 * jax.random.normal(ks[10], (1, DIM_H2), jnp.float32)
    be2 = 0.1 * jax.random.normal(ks[11], (1, DIM_H2), jnp.float32)
    rm2 = 0.1 * jax.random.normal(ks[12], (1, DIM_H2), jnp.float32)
    rv2 = 0.5 + jax.random.uniform(ks[13], (1, DIM_H2), jnp.float32)

    return dict(w1=w1, b1=b1, g1=g1, be1=be1, rm1=rm1, rv1=rv1,
                w2=w2, b2=b2, g2=g2, be2=be2, rm2=rm2, rv2=rv2,
                w3=w3, b3=b3)


def prep_params(raw):
    """Fold eval-mode BatchNorm into the preceding linear layers; cast weights to bf16."""
    s1 = raw["g1"] * jax.lax.rsqrt(raw["rv1"] + BN_EPS)
    w1 = raw["w1"] * s1                                   # scale columns
    b1 = (raw["b1"] - raw["rm1"]) * s1 + raw["be1"]

    s2 = raw["g2"] * jax.lax.rsqrt(raw["rv2"] + BN_EPS)
    w2 = raw["w2"] * s2
    b2 = (raw["b2"] - raw["rm2"]) * s2 + raw["be2"]

    return dict(
        w1=w1.astype(jnp.bfloat16), b1=b1,
        w2=w2.astype(jnp.bfloat16), b2=b2,
        w3=raw["w3"].astype(jnp.bfloat16), b3=raw["b3"],
    )


# ---------------------------------------------------------------------------
# References
# ---------------------------------------------------------------------------
def reference_f32(x, raw):
    """Exact eval-mode PyTorch semantics, all f32."""
    x = x.astype(jnp.float32)
    h = x @ raw["w1"] + raw["b1"]
    h = (h - raw["rm1"]) / jnp.sqrt(raw["rv1"] + BN_EPS) * raw["g1"] + raw["be1"]
    h = jnp.maximum(h, 0.0)
    h = h @ raw["w2"] + raw["b2"]
    h = (h - raw["rm2"]) / jnp.sqrt(raw["rv2"] + BN_EPS) * raw["g2"] + raw["be2"]
    h = jnp.maximum(h, 0.0)
    o = h @ raw["w3"] + raw["b3"]
    return o[:, :DIM_Z], jax.nn.softplus(o[:, DIM_Z:]) + 1e-8


def reference_bf16(x, p):
    """Same folded-BN / bf16 numerics as the kernel, in plain JAX."""
    h = jnp.dot(x.astype(jnp.bfloat16), p["w1"],
                preferred_element_type=jnp.float32) + p["b1"]
    h = jnp.maximum(h, 0.0)
    h = jnp.dot(h.astype(jnp.bfloat16), p["w2"],
                preferred_element_type=jnp.float32) + p["b2"]
    h = jnp.maximum(h, 0.0)
    o = jnp.dot(h.astype(jnp.bfloat16), p["w3"],
                preferred_element_type=jnp.float32) + p["b3"]
    return o[:, :DIM_Z], jax.nn.softplus(o[:, DIM_Z:]) + 1e-8


def _check(x, raw, params, tag):
    B = x.shape[0]
    m, v = encoder_forward(x, params)
    m = jax.block_until_ready(m)
    v = jax.block_until_ready(v)
    assert m.shape == (B, DIM_Z) and v.shape == (B, DIM_Z), tag
    assert bool(jnp.all(jnp.isfinite(m))) and bool(jnp.all(jnp.isfinite(v))), tag
    assert bool(jnp.all(v > 0.0)), tag

    # tight check against a reference with identical (folded-BN, bf16) numerics
    m_bf, v_bf = reference_bf16(x, params)
    assert jnp.allclose(m, m_bf, atol=2e-3, rtol=2e-3), tag
    assert jnp.allclose(v, v_bf, atol=2e-3, rtol=2e-3), tag

    # looser check against the exact f32 PyTorch-semantics reference (bf16 weight drift)
    m_f32, v_f32 = reference_f32(x, raw)
    assert jnp.allclose(m, m_f32, atol=8e-2, rtol=8e-2), tag
    assert jnp.allclose(v, v_f32, atol=8e-2, rtol=8e-2), tag


if __name__ == "__main__":
    key = jax.random.PRNGKey(0)
    kx1, kx2, kp = jax.random.split(key, 3)

    raw = make_raw_params(kp)
    params = prep_params(raw)

    # Case 1: bf16 activations written by the producer (preferred on v6e/v7x);
    # B=48 -> tile 24, grid of 2 steps (exercises megacore-shardable grid).
    x_bf16 = jax.random.normal(kx1, (48, DIM_IN), jnp.float32).astype(jnp.bfloat16)
    _check(x_bf16, raw, params, "bf16 x, even grid")

    # Case 2: f32 activations with a ragged batch (B=52 -> tile 32, partial final
    # tile exercises the masked-writeback path; confirms no NaNs leak into valid rows).
    x_f32 = jax.random.normal(kx2, (52, DIM_IN), jnp.float32)
    _check(x_f32, raw, params, "f32 x, ragged grid")

    print("KERNEL_OK")
</pallas_src>

<mosaic_0001>
module attributes {stable_mosaic.version = 11 : i64} {
  func.func @encoder_kernel(%arg0: i32, %arg1: memref<24x1024xbf16, #tpu.memory_space<vmem>>, %arg2: memref<1024x512xbf16, #tpu.memory_space<vmem>>, %arg3: memref<1x512xf32, #tpu.memory_space<vmem>>, %arg4: memref<512x256xbf16, #tpu.memory_space<vmem>>, %arg5: memref<1x256xf32, #tpu.memory_space<vmem>>, %arg6: memref<256x6xbf16, #tpu.memory_space<vmem>>, %arg7: memref<1x6xf32, #tpu.memory_space<vmem>>, %arg8: memref<24x6xf32, #tpu.memory_space<vmem>>) attributes {dimension_semantics = [#tpu.dimension_semantics<parallel>], iteration_bounds = array<i64: 2>, scalar_prefetch = 0 : i64, scratch_operands = 0 : i64, tpu.core_type = #tpu.core_type<tc>, window_params = [{transform_indices = @transform_0, window_bounds = array<i64: 24, 1024>}, {pipeline_mode = #tpu.pipeline_mode<synchronous>, transform_indices = @transform_1, window_bounds = array<i64: 1024, 512>}, {pipeline_mode = #tpu.pipeline_mode<synchronous>, transform_indices = @transform_2, window_bounds = array<i64: 1, 512>}, {pipeline_mode = #tpu.pipeline_mode<synchronous>, transform_indices = @transform_3, window_bounds = array<i64: 512, 256>}, {pipeline_mode = #tpu.pipeline_mode<synchronous>, transform_indices = @transform_4, window_bounds = array<i64: 1, 256>}, {pipeline_mode = #tpu.pipeline_mode<synchronous>, transform_indices = @transform_5, window_bounds = array<i64: 256, 6>}, {pipeline_mode = #tpu.pipeline_mode<synchronous>, transform_indices = @transform_6, window_bounds = array<i64: 1, 6>}, {transform_indices = @transform_7, window_bounds = array<i64: 24, 6>}]} {
    %c0 = arith.constant 0 : index
    %c0_0 = arith.constant 0 : index
    %0 = vector.load %arg1[%c0, %c0_0] : memref<24x1024xbf16, #tpu.memory_space<vmem>>, vector<24x1024xbf16>
    %c0_1 = arith.constant 0 : index
    %c0_2 = arith.constant 0 : index
    %1 = vector.load %arg2[%c0_1, %c0_2] : memref<1024x512xbf16, #tpu.memory_space<vmem>>, vector<1024x512xbf16>
    %cst = arith.constant dense<0.000000e+00> : vector<24x512xf32>
    %2 = tpu.matmul %0, %1, %cst {dimension_numbers = #tpu.dot_dimension_numbers<[1], [0], [0], [1], [0, 0, 1, 1], [], []>} : vector<24x1024xbf16>, vector<1024x512xbf16>, vector<24x512xf32> -> vector<24x512xf32>
    %c0_3 = arith.constant 0 : index
    %c0_4 = arith.constant 0 : index
    %3 = vector.load %arg3[%c0_3, %c0_4] : memref<1x512xf32, #tpu.memory_space<vmem>>, vector<1x512xf32>
    %4 = vector.broadcast %3 : vector<1x512xf32> to vector<24x512xf32>
    %5 = arith.addf %2, %4 : vector<24x512xf32>
    %cst_5 = arith.constant 0.000000e+00 : f32
    %6 = vector.broadcast %cst_5 : f32 to vector<24x512xf32>
    %7 = arith.maximumf %5, %6 : vector<24x512xf32>
    %8 = arith.truncf %7 : vector<24x512xf32> to vector<24x512xbf16>
    %c0_6 = arith.constant 0 : index
    %c0_7 = arith.constant 0 : index
    %9 = vector.load %arg4[%c0_6, %c0_7] : memref<512x256xbf16, #tpu.memory_space<vmem>>, vector<512x256xbf16>
    %cst_8 = arith.constant dense<0.000000e+00> : vector<24x256xf32>
    %10 = tpu.matmul %8, %9, %cst_8 {dimension_numbers = #tpu.dot_dimension_numbers<[1], [0], [0], [1], [0, 0, 1, 1], [], []>} : vector<24x512xbf16>, vector<512x256xbf16>, vector<24x256xf32> -> vector<24x256xf32>
    %c0_9 = arith.constant 0 : index
    %c0_10 = arith.constant 0 : index
    %11 = vector.load %arg5[%c0_9, %c0_10] : memref<1x256xf32, #tpu.memory_space<vmem>>, vector<1x256xf32>
    %12 = vector.broadcast %11 : vector<1x256xf32> to vector<24x256xf32>
    %13 = arith.addf %10, %12 : vector<24x256xf32>
    %cst_11 = arith.constant 0.000000e+00 : f32
    %14 = vector.broadcast %cst_11 : f32 to vector<24x256xf32>
    %15 = arith.maximumf %13, %14 : vector<24x256xf32>
    %16 = arith.truncf %15 : vector<24x256xf32> to vector<24x256xbf16>
    %c0_12 = arith.constant 0 : index
    %c0_13 = arith.constant 0 : index
    %17 = vector.load %arg6[%c0_12, %c0_13] : memref<256x6xbf16, #tpu.memory_space<vmem>>, vector<256x6xbf16>
    %cst_14 = arith.constant dense<0.000000e+00> : vector<24x6xf32>
    %18 = tpu.matmul %16, %17, %cst_14 {dimension_numbers = #tpu.dot_dimension_numbers<[1], [0], [0], [1], [0, 0, 1, 1], [], []>} : vector<24x256xbf16>, vector<256x6xbf16>, vector<24x6xf32> -> vector<24x6xf32>
    %c0_15 = arith.constant 0 : index
    %c0_16 = arith.constant 0 : index
    %19 = vector.load %arg7[%c0_15, %c0_16] : memref<1x6xf32, #tpu.memory_space<vmem>>, vector<1x6xf32>
    %20 = vector.broadcast %19 : vector<1x6xf32> to vector<24x6xf32>
    %21 = arith.addf %18, %20 : vector<24x6xf32>
    %22 = tpu.iota {dimensions = array<i32: 1>} : vector<24x6xi32>
    %c3_i32 = arith.constant 3 : i32
    %23 = vector.broadcast %c3_i32 : i32 to vector<24x6xi32>
    %24 = arith.cmpi slt, %22, %23 : vector<24x6xi32>
    %cst_17 = arith.constant 0.000000e+00 : f32
    %25 = vector.broadcast %cst_17 : f32 to vector<24x6xf32>
    %26 = arith.maximumf %21, %25 : vector<24x6xf32>
    %27 = math.absf %21 : vector<24x6xf32>
    %cst_18 = arith.constant 0.000000e+00 : f32
    %28 = vector.broadcast %cst_18 : f32 to vector<24x6xf32>
    %29 = arith.subf %28, %27 : vector<24x6xf32>
    %30 = math.exp %29 : vector<24x6xf32>
    %31 = math.log1p %30 : vector<24x6xf32>
    %32 = arith.addf %26, %31 : vector<24x6xf32>
    %cst_19 = arith.constant 9.99999993E-9 : f32
    %33 = vector.broadcast %cst_19 : f32 to vector<24x6xf32>
    %34 = arith.addf %32, %33 : vector<24x6xf32>
    %35 = arith.select %24, %21, %34 : vector<24x6xi1>, vector<24x6xf32>
    %c0_20 = arith.constant 0 : index
    %c0_21 = arith.constant 0 : index
    %36 = vector.load %arg8[%c0_20, %c0_21] : memref<24x6xf32, #tpu.memory_space<vmem>>, vector<24x6xf32>
    tpu.vector_store %arg8[%c0_20, %c0_21], %35 {strides = array<i32>} : memref<24x6xf32, #tpu.memory_space<vmem>>, vector<24x6xf32>,
    return
  }
  func.func @transform_0(%arg0: i32) -> (i32, i32) {
    %c0_i32 = arith.constant 0 : i32
    %c0_i32_0 = arith.constant 0 : i32
    return %arg0, %c0_i32 : i32, i32
  }
  func.func @transform_1(%arg0: i32) -> (i32, i32) {
    %c0_i32 = arith.constant 0 : i32
    %c0_i32_0 = arith.constant 0 : i32
    %c0_i32_1 = arith.constant 0 : i32
    return %c0_i32, %c0_i32_0 : i32, i32
  }
  func.func @transform_2(%arg0: i32) -> (i32, i32) {
    %c0_i32 = arith.constant 0 : i32
    %c0_i32_0 = arith.constant 0 : i32
    %c0_i32_1 = arith.constant 0 : i32
    return %c0_i32, %c0_i32_0 : i32, i32
  }
  func.func @transform_3(%arg0: i32) -> (i32, i32) {
    %c0_i32 = arith.constant 0 : i32
    %c0_i32_0 = arith.constant 0 : i32
    %c0_i32_1 = arith.constant 0 : i32
    return %c0_i32, %c0_i32_0 : i32, i32
  }
  func.func @transform_4(%arg0: i32) -> (i32, i32) {
    %c0_i32 = arith.constant 0 : i32
    %c0_i32_0 = arith.constant 0 : i32
    %c0_i32_1 = arith.constant 0 : i32
    return %c0_i32, %c0_i32_0 : i32, i32
  }
  func.func @transform_5(%arg0: i32) -> (i32, i32) {
    %c0_i32 = arith.constant 0 : i32
    %c0_i32_0 = arith.constant 0 : i32
    %c0_i32_1 = arith.constant 0 : i32
    return %c0_i32, %c0_i32_0 : i32, i32
  }
  func.func @transform_6(%arg0: i32) -> (i32, i32) {
    %c0_i32 = arith.constant 0 : i32
    %c0_i32_0 = arith.constant 0 : i32
    %c0_i32_1 = arith.constant 0 : i32
    return %c0_i32, %c0_i32_0 : i32, i32
  }
  func.func @transform_7(%arg0: i32) -> (i32, i32) {
    %c0_i32 = arith.constant 0 : i32
    %c0_i32_0 = arith.constant 0 : i32
    return %arg0, %c0_i32 : i32, i32
  }
}

</mosaic_0001>

<llo_original>
// kernel: encoder_forward.1
$region0: #{encoder_forward.1}
  #allocation0 [shape = 'u32[]', space=smem, size = 0x4, offset = 0x4, fixed_abs, tag = 'smem constant byte address 0x4 - core index']
  #allocation1 [shape = 'u32[144,128]{1,0:T(1,128)}', space=vmem, size = 0x12000, scoped, tag = 'internal scratch']
  %s0 = inlined_call_operand.hbm [shape: bf16[48,1024], index: 0, kind: input, shape index: {}]
  %s1 = inlined_call_operand.hbm [shape: bf16[1024,512], index: 1, kind: input, shape index: {}]
  %s2 = inlined_call_operand.vmem [shape: f32[1,512], index: 2, kind: input, shape index: {}]
  %s3 = inlined_call_operand.hbm [shape: bf16[512,256], index: 3, kind: input, shape index: {}]
  %s4 = inlined_call_operand.vmem [shape: f32[1,256], index: 4, kind: input, shape index: {}]
  %s5 = inlined_call_operand.vmem [shape: bf16[256,6], index: 5, kind: input, shape index: {}]
  %s6 = inlined_call_operand.vmem [shape: f32[1,6], index: 6, kind: input, shape index: {}]
  %s7 = inlined_call_operand.vmem [shape: f32[48,6], index: 7, kind: output, shape index: {}]
  %s8 = sld [smem:[#allocation0]]
  $region73: #{encoder_forward.1} parent=0
    _
  %s10 = ssub.s32 1, %s8
  %s11 = scalar_select 0, %s10, %s8
  $region1: #{encoder_forward.1} parent=0
    #allocation2 [shape = 'u8[98304]{0}', space=vmem, size = 0x18000, scoped, tag = 'input window, operand 0']
    #allocation3 [shape = 's32[2]{0}', space=sflag, size = 0x8, scoped, tag = 'scoped memory for encoder_forward.1']
    #allocation4 [shape = 'u8[1048576]{0}', space=vmem, size = 0x100000, scoped, tag = 'input window, operand 1, single buffered']
    #allocation5 [shape = 's32[1]{0}', space=sflag, size = 0x4, scoped, tag = 'scoped memory for encoder_forward.1']
    #allocation6 [shape = 'u8[262144]{0}', space=vmem, size = 0x40000, scoped, tag = 'input window, operand 3, single buffered']
    %12 = vsyncpa [#allocation3], 0
    %s13 = scalar_lea.sflag [#allocation3], 1
    %14 = vsyncpa %s13, 0
    %15 = vsyncpa [#allocation5], 0
    loop: start=0, step=1, limit=4
    $region2: #{encoder_forward.1} parent=1 // loop_pre_header
      _
    $region3: #{encoder_forward.1} parent=1 // loop_header
      %s17 = sphi 0, %s21
      %p18 = scmp.ge.s32.totalorder %s17, 4
      %s27 = sphi 0, %s29
      %s30 = sphi 0, %s27
      %s31 = sphi 0, %s30
      %s47 = sphi 0, %s31
      %s51 = sphi 0, %s51
      %s53 = sphi 0, %s51
      %s54 = sphi 0, %s53
      %s68 = sphi 0, %s54
      %s72 = sphi 0, %s72
      %s74 = sphi 0, %s72
      %s75 = sphi 0, %s74
      %s89 = sphi 0, %s75
      %s93 = sphi 0, %s93
      %s95 = sphi 0, %s93
      %s96 = sphi 0, %s95
      %s110 = sphi 0, %s96
      %s114 = sphi 0, %s114
      %s116 = sphi 0, %s114
      %s117 = sphi 0, %s116
      %s131 = sphi 0, %s117
      %s135 = sphi 0, %s135
      %s137 = sphi 0, %s135
      %s138 = sphi 0, %s137
      %s152 = sphi 0, %s138
      %s156 = sphi 0, %s156
      %s158 = sphi 0, %s156
      %s159 = sphi 0, %s158
      %s173 = sphi 0, %s159
      %s179 = sphi 0, %s181
      %s182 = sphi 0, %s179
      %s183 = sphi 0, %s182
      %s199 = sphi 0, %s183
    $region4: #{encoder_forward.1} parent=1 // loop_header_branch
      %20 = sbr.rel (%p18) target = $region8
    $region5: #{encoder_forward.1} parent=1 // loop_body
      %s22 = ssub.s32 %s17, 1
      %s23 = ssub.s32 %s17, 2
      %s24 = sadd.s32 %s17, 1
      %s25 = ssub.s32 %s17, %s24
      %p26 = scmp.eq.s32.totalorder %s25, 0
      %s28 = sadd.s32 %s27, 1
      %s29 = scalar_select %p26, %s27, %s28
      %p32 = pneg %p26
      %p33 = scmp.eq.s32.totalorder %s17, 1
      %p34 = por %p32, %p33
      %p35 = scmp.ne.s32.totalorder %s27, %s30
      %p36 = scmp.eq.s32.totalorder %s17, 0
      %p37 = por %p35, %p36
      %p38 = scmp.ne.s32.totalorder %s27, %s30
      %p39 = scmp.eq.s32.totalorder %s22, 1
      %p40 = por %p38, %p39
      %p41 = scmp.ne.s32.totalorder %s30, %s31
      %p42 = scmp.eq.s32.totalorder %s22, 0
      %p43 = por %p41, %p42
      %p44 = scmp.ne.s32.totalorder %s30, %s31
      %p45 = scmp.eq.s32.totalorder %s23, 1
      %p46 = por %p44, %p45
      %p48 = scmp.ne.s32.totalorder %s31, %s47
      %p49 = scmp.eq.s32.totalorder %s23, 0
      %p50 = por %p48, %p49
      %s52 = sadd.s32 %s51, 1
      %p55 = scmp.eq.s32.totalorder %s17, 1
      %p56 = scmp.ne.s32.totalorder %s51, %s53
      %p57 = scmp.eq.s32.totalorder %s17, 0
      %p58 = por %p56, %p57
      %p59 = scmp.ne.s32.totalorder %s51, %s53
      %p60 = scmp.eq.s32.totalorder %s22, 1
      %p61 = por %p59, %p60
      %p62 = scmp.ne.s32.totalorder %s53, %s54
      %p63 = scmp.eq.s32.totalorder %s22, 0
      %p64 = por %p62, %p63
      %p65 = scmp.ne.s32.totalorder %s53, %s54
      %p66 = scmp.eq.s32.totalorder %s23, 1
      %p67 = por %p65, %p66
      %p69 = scmp.ne.s32.totalorder %s54, %s68
      %p70 = scmp.eq.s32.totalorder %s23, 0
      %p71 = por %p69, %p70
      %s73 = sadd.s32 %s72, 1
      %p76 = scmp.eq.s32.totalorder %s17, 1
      %p77 = scmp.ne.s32.totalorder %s72, %s74
      %p78 = scmp.eq.s32.totalorder %s17, 0
      %p79 = por %p77, %p78
      %p80 = scmp.ne.s32.totalorder %s72, %s74
      %p81 = scmp.eq.s32.totalorder %s22, 1
      %p82 = por %p80, %p81
      %p83 = scmp.ne.s32.totalorder %s74, %s75
      %p84 = scmp.eq.s32.totalorder %s22, 0
      %p85 = por %p83, %p84
      %p86 = scmp.ne.s32.totalorder %s74, %s75
      %p87 = scmp.eq.s32.totalorder %s23, 1
      %p88 = por %p86, %p87
      %p90 = scmp.ne.s32.totalorder %s75, %s89
      %p91 = scmp.eq.s32.totalorder %s23, 0
      %p92 = por %p90, %p91
      %s94 = sadd.s32 %s93, 1
      %p97 = scmp.eq.s32.totalorder %s17, 1
      %p98 = scmp.ne.s32.totalorder %s93, %s95
      %p99 = scmp.eq.s32.totalorder %s17, 0
      %p100 = por %p98, %p99
      %p101 = scmp.ne.s32.totalorder %s93, %s95
      %p102 = scmp.eq.s32.totalorder %s22, 1
      %p103 = por %p101, %p102
      %p104 = scmp.ne.s32.totalorder %s95, %s96
      %p105 = scmp.eq.s32.totalorder %s22, 0
      %p106 = por %p104, %p105
      %p107 = scmp.ne.s32.totalorder %s95, %s96
      %p108 = scmp.eq.s32.totalorder %s23, 1
      %p109 = por %p107, %p108
      %p111 = scmp.ne.s32.totalorder %s96, %s110
      %p112 = scmp.eq.s32.totalorder %s23, 0
      %p113 = por %p111, %p112
      %s115 = sadd.s32 %s114, 1
      %p118 = scmp.eq.s32.totalorder %s17, 1
      %p119 = scmp.ne.s32.totalorder %s114, %s116
      %p120 = scmp.eq.s32.totalorder %s17, 0
      %p121 = por %p119, %p120
      %p122 = scmp.ne.s32.totalorder %s114, %s116
      %p123 = scmp.eq.s32.totalorder %s22, 1
      %p124 = por %p122, %p123
      %p125 = scmp.ne.s32.totalorder %s116, %s117
      %p126 = scmp.eq.s32.totalorder %s22, 0
      %p127 = por %p125, %p126
      %p128 = scmp.ne.s32.totalorder %s116, %s117
      %p129 = scmp.eq.s32.totalorder %s23, 1
      %p130 = por %p128, %p129
      %p132 = scmp.ne.s32.totalorder %s117, %s131
      %p133 = scmp.eq.s32.totalorder %s23, 0
      %p134 = por %p132, %p133
      %s136 = sadd.s32 %s135, 1
      %p139 = scmp.eq.s32.totalorder %s17, 1
      %p140 = scmp.ne.s32.totalorder %s135, %s137
      %p141 = scmp.eq.s32.totalorder %s17, 0
      %p142 = por %p140, %p141
      %p143 = scmp.ne.s32.totalorder %s135, %s137
      %p144 = scmp.eq.s32.totalorder %s22, 1
      %p145 = por %p143, %p144
      %p146 = scmp.ne.s32.totalorder %s137, %s138
      %p147 = scmp.eq.s32.totalorder %s22, 0
      %p148 = por %p146, %p147
      %p149 = scmp.ne.s32.totalorder %s137, %s138
      %p150 = scmp.eq.s32.totalorder %s23, 1
      %p151 = por %p149, %p150
      %p153 = scmp.ne.s32.totalorder %s138, %s152
      %p154 = scmp.eq.s32.totalorder %s23, 0
      %p155 = por %p153, %p154
      %s157 = sadd.s32 %s156, 1
      %p160 = scmp.eq.s32.totalorder %s17, 1
      %p161 = scmp.ne.s32.totalorder %s156, %s158
      %p162 = scmp.eq.s32.totalorder %s17, 0
      %p163 = por %p161, %p162
      %p164 = scmp.ne.s32.totalorder %s156, %s158
      %p165 = scmp.eq.s32.totalorder %s22, 1
      %p166 = por %p164, %p165
      %p167 = scmp.ne.s32.totalorder %s158, %s159
      %p168 = scmp.eq.s32.totalorder %s22, 0
      %p169 = por %p167, %p168
      %p170 = scmp.ne.s32.totalorder %s158, %s159
      %p171 = scmp.eq.s32.totalorder %s23, 1
      %p172 = por %p170, %p171
      %p174 = scmp.ne.s32.totalorder %s159, %s173
      %p175 = scmp.eq.s32.totalorder %s23, 0
      %p176 = por %p174, %p175
      %s177 = ssub.s32 %s17, %s24
      %p178 = scmp.eq.s32.totalorder %s177, 0
      %s180 = sadd.s32 %s179, 1
      %s181 = scalar_select %p178, %s179, %s180
      %p184 = pneg %p178
      %p185 = scmp.eq.s32.totalorder %s17, 1
      %p186 = por %p184, %p185
      %p187 = scmp.ne.s32.totalorder %s179, %s182
      %p188 = scmp.eq.s32.totalorder %s17, 0
      %p189 = por %p187, %p188
      %p190 = scmp.ne.s32.totalorder %s179, %s182
      %p191 = scmp.eq.s32.totalorder %s22, 1
      %p192 = por %p190, %p191
      %p193 = scmp.ne.s32.totalorder %s182, %s183
      %p194 = scmp.eq.s32.totalorder %s22, 0
      %p195 = por %p193, %p194
      %p196 = scmp.ne.s32.totalorder %s182, %s183
      %p197 = scmp.eq.s32.totalorder %s23, 1
      %p198 = por %p196, %p197
      %p200 = scmp.ne.s32.totalorder %s183, %s199
      %p201 = scmp.eq.s32.totalorder %s23, 0
      %p202 = por %p200, %p201
      %p203 = scmp.le.s32.totalorder 1, %s17
      %p204 = scmp.lt.s32.totalorder %s17, 3
      %p205 = pnand %p203, %p204
      %p206 = pneg %p205
      // Predicated region
      $region9: #{encoder_forward.1} parent=5 // pred_check
        _
      $region10: #{encoder_forward.1} parent=5 // pred_check_branch
        %208 = sbr.rel (%p205) target = $region12
      $region11: #{encoder_forward.1} parent=5 // pred_region
        %s209 = ssub.s32 %s17, 1
        // Predicated region
        $region13: #{encoder_forward.1} parent=11 // pred_check
          %p210 = pneg %p64
        $region14: #{encoder_forward.1} parent=11 // pred_check_branch
          %212 = sbr.rel (%p210) target = $region16
        $region15: #{encoder_forward.1} parent=11 // pred_region
          %s214 = ssub.s32 32768, 32768
          %215 = vsyncadd [#allocation5], %s214
          %s216 = sshll.u32 [#allocation4], 4
          %s217 = int_to_ptr.vmem [resolvable:$true] %s216
          %222 = dma.hbm_to_vmem [thread:$0]  %s1, 32768, %s217, [#allocation5], 256, 256, 16
        $region16: #{encoder_forward.1} parent=11 // pred_fallthru
          _
        // Predicated region
        $region17: #{encoder_forward.1} parent=11 // pred_check
          %p223 = pneg %p85
        $region18: #{encoder_forward.1} parent=11 // pred_check_branch
          %225 = sbr.rel (%p223) target = $region20
        $region19: #{encoder_forward.1} parent=11 // pred_region
          _
        $region20: #{encoder_forward.1} parent=11 // pred_fallthru
          _
        // Predicated region
        $region21: #{encoder_forward.1} parent=11 // pred_check
          %p226 = pneg %p106
        $region22: #{encoder_forward.1} parent=11 // pred_check_branch
          %228 = sbr.rel (%p226) target = $region24
        $region23: #{encoder_forward.1} parent=11 // pred_region
          %s230 = ssub.s32 8192, 8192
          %231 = vsyncadd [#allocation5], %s230
          %s232 = sshll.u32 [#allocation6], 4
          %s233 = int_to_ptr.vmem [resolvable:$true] %s232
          %238 = dma.hbm_to_vmem [thread:$0]  %s3, 8192, %s233, [#allocation5], 128, 128, 8
        $region24: #{encoder_forward.1} parent=11 // pred_fallthru
          _
        // Predicated region
        $region25: #{encoder_forward.1} parent=11 // pred_check
          %p239 = pneg %p127
        $region26: #{encoder_forward.1} parent=11 // pred_check_branch
          %241 = sbr.rel (%p239) target = $region28
        $region27: #{encoder_forward.1} parent=11 // pred_region
          _
        $region28: #{encoder_forward.1} parent=11 // pred_fallthru
          _
        // Predicated region
        $region29: #{encoder_forward.1} parent=11 // pred_check
          %p242 = pneg %p148
        $region30: #{encoder_forward.1} parent=11 // pred_check_branch
          %244 = sbr.rel (%p242) target = $region32
        $region31: #{encoder_forward.1} parent=11 // pred_region
          _
        $region32: #{encoder_forward.1} parent=11 // pred_fallthru
          _
        // Predicated region
        $region33: #{encoder_forward.1} parent=11 // pred_check
          %p245 = pneg %p169
        $region34: #{encoder_forward.1} parent=11 // pred_check_branch
          %247 = sbr.rel (%p245) target = $region36
        $region35: #{encoder_forward.1} parent=11 // pred_region
          _
        $region36: #{encoder_forward.1} parent=11 // pred_fallthru
          _
      $region12: #{encoder_forward.1} parent=5 // pred_fallthru
        _
      %p248 = scmp.lt.s32.totalorder %s17, 2
      // Predicated region
      $region37: #{encoder_forward.1} parent=5 // pred_check
        %p249 = pneg %p248
      $region38: #{encoder_forward.1} parent=5 // pred_check_branch
        %251 = sbr.rel (%p249) target = $region40
      $region39: #{encoder_forward.1} parent=5 // pred_region
        // Predicated region
        $region41: #{encoder_forward.1} parent=39 // pred_check
          %p252 = pneg %p37
        $region42: #{encoder_forward.1} parent=39 // pred_check_branch
          %254 = sbr.rel (%p252) target = $region44
        $region43: #{encoder_forward.1} parent=39 // pred_region
          %s255 = sand.u32 %s27, 1
          %s256 = scalar_lea.sflag [#allocation3], %s255
          %s257 = sand.u32 %s27, 1
          %s258 = smul.addr %s257, 96
          %s259 = scalar_lea.vmem [#allocation2], %s258
          %s260 = smul.u32 3, %s17
          %s262 = ssub.s32 1536, 1536
          %263 = vsyncadd %s256, %s262
          %s264 = smul.addr %s260, 8
          %s265 = smul.addr %s264, 64
          %s266 = scalar_lea.hbm %s0, %s265
          %s267 = sshll.u32 %s259, 4
          %s268 = int_to_ptr.vmem [resolvable:$true] %s267
          %273 = dma.hbm_to_vmem [thread:$0]  %s266, 1536, %s268, %s256, 512, 512, 32
        $region44: #{encoder_forward.1} parent=39 // pred_fallthru
          _
      $region40: #{encoder_forward.1} parent=5 // pred_fallthru
        _
      %p274 = scmp.le.s32.totalorder 1, %s17
      %p275 = scmp.lt.s32.totalorder %s17, 3
      %p276 = pnand %p274, %p275
      %p277 = pneg %p276
      // Predicated region
      $region45: #{encoder_forward.1} parent=5 // pred_check
        _
      $region46: #{encoder_forward.1} parent=5 // pred_check_branch
        %279 = sbr.rel (%p276) target = $region48
      $region47: #{encoder_forward.1} parent=5 // pred_region
        %s280 = ssub.s32 %s17, 1
        %s281 = sand.u32 %s30, 1
        %s282 = scalar_lea.sflag [#allocation3], %s281
        %s283 = sand.u32 %s30, 1
        %s284 = smul.addr %s283, 96
        %s285 = scalar_lea.vmem [#allocation2], %s284
        // Predicated region
        $region49: #{encoder_forward.1} parent=47 // pred_check
          %p286 = pneg %p43
        $region50: #{encoder_forward.1} parent=47 // pred_check_branch
          %288 = sbr.rel (%p286) target = $region52
        $region51: #{encoder_forward.1} parent=47 // pred_region
          %289 = dma.done %s282, 1536
        $region52: #{encoder_forward.1} parent=47 // pred_fallthru
          _
        // Predicated region
        $region53: #{encoder_forward.1} parent=47 // pred_check
          %p290 = pneg %p64
        $region54: #{encoder_forward.1} parent=47 // pred_check_branch
          %292 = sbr.rel (%p290) target = $region56
        $region55: #{encoder_forward.1} parent=47 // pred_region
          %293 = dma.done [#allocation5], 32768
        $region56: #{encoder_forward.1} parent=47 // pred_fallthru
          _
        // Predicated region
        $region57: #{encoder_forward.1} parent=47 // pred_check
          %p294 = pneg %p106
        $region58: #{encoder_forward.1} parent=47 // pred_check_branch
          %296 = sbr.rel (%p294) target = $region60
        $region59: #{encoder_forward.1} parent=47 // pred_region
          %297 = dma.done [#allocation5], 8192
        $region60: #{encoder_forward.1} parent=47 // pred_fallthru
          _
        %s298 = sand.u32 %s30, 1
        %s299 = scalar_lea.sflag [#allocation3], %s298
        %s300 = sand.u32 %s30, 1
        %s301 = smul.addr %s300, 96
        %s302 = scalar_lea.vmem [#allocation2], %s301
        %p303 = pneg %p43
        %p304 = pneg %p40
        %p305 = pneg %p64
        %p306 = pneg %p61
        %p307 = pneg %p85
        %p308 = pneg %p82
        %p309 = pneg %p106
        %p310 = pneg %p103
        %p311 = pneg %p127
        %p312 = pneg %p124
        %p313 = pneg %p148
        %p314 = pneg %p145
        %p315 = pneg %p169
        %p316 = pneg %p166
        %p317 = pneg %p195
        %p318 = pneg %p192
        %s319 = smul.u32 3, %s22
        %p320 = scmp.lt.s32.totalorder %s319, 5
        %s321 = scalar_select %p320, %s319, 5
        %s322 = smul.addr %s321, 8
        %s323 = scalar_lea.vmem %s7, %s322
        %s324 = smul.u32 3, %s22
        %s325 = smul.u32 3, %s22
        %p326 = scmp.lt.s32.totalorder %s325, 5
        %s327 = scalar_select %p326, %s325, 5
        %s328 = smul.addr %s327, 8
        %s329 = scalar_lea.vmem %s7, %s328
        %s330 = smul.u32 3, %s22
        %v332 = vld [vmem:[%s285] sm:$0xff]
        %v333 = vld [vmem:[%s285 + $0x8] sm:$0xff]
        %v334 = vld [vmem:[%s285 + $0x10] sm:$0xff]
        %v335 = vld [vmem:[%s285 + $0x18] sm:$0xff]
        %v336 = vld [vmem:[%s285 + $0x20] sm:$0xff]
        %v337 = vld [vmem:[%s285 + $0x28] sm:$0xff]
        %v338 = vld [vmem:[%s285 + $0x30] sm:$0xff]
        %v339 = vld [vmem:[%s285 + $0x38] sm:$0xff]
        %v340 = vld [vmem:[%s285 + $0x40] sm:$0xff]
        %v341 = vld [vmem:[%s285 + $0x48] sm:$0xff]
        %v342 = vld [vmem:[%s285 + $0x50] sm:$0xff]
        %v343 = vld [vmem:[%s285 + $0x58] sm:$0xff]
        %v344 = vld [vmem:[#allocation4] sm:$0xff]
        %v345 = vld [vmem:[#allocation4 + $0x8] sm:$0xff]
        %v346 = vld [vmem:[#allocation4 + $0x10] sm:$0xff]
        %v347 = vld [vmem:[#allocation4 + $0x18] sm:$0xff]
        %v348 = vld [vmem:[#allocation4 + $0x20] sm:$0xff]
        %v349 = vld [vmem:[#allocation4 + $0x28] sm:$0xff]
        %v350 = vld [vmem:[#allocation4 + $0x30] sm:$0xff]
        %v351 = vld [vmem:[#allocation4 + $0x38] sm:$0xff]
        %v352 = vld [vmem:[#allocation4 + $0x40] sm:$0xff]
        %v353 = vld [vmem:[#allocation4 + $0x48] sm:$0xff]
        %v354 = vld [vmem:[#allocation4 + $0x50] sm:$0xff]
        %v355 = vld [vmem:[#allocation4 + $0x58] sm:$0xff]
        %v356 = vld [vmem:[#allocation4 + $0x60] sm:$0xff]
        %v357 = vld [vmem:[#allocation4 + $0x68] sm:$0xff]
        %v358 = vld [vmem:[#allocation4 + $0x70] sm:$0xff]
        %v359 = vld [vmem:[#allocation4 + $0x78] sm:$0xff]
        %v360 = vld [vmem:[#allocation4 + $0x80] sm:$0xff]
        %v361 = vld [vmem:[#allocation4 + $0x88] sm:$0xff]
        %v362 = vld [vmem:[#allocation4 + $0x90] sm:$0xff]
        %v363 = vld [vmem:[#allocation4 + $0x98] sm:$0xff]
        %v364 = vld [vmem:[#allocation4 + $0xa0] sm:$0xff]
        %v365 = vld [vmem:[#allocation4 + $0xa8] sm:$0xff]
        %v366 = vld [vmem:[#allocation4 + $0xb0] sm:$0xff]
        %v367 = vld [vmem:[#allocation4 + $0xb8] sm:$0xff]
        %v368 = vld [vmem:[#allocation4 + $0xc0] sm:$0xff]
        %v369 = vld [vmem:[#allocation4 + $0xc8] sm:$0xff]
        %v370 = vld [vmem:[#allocation4 + $0xd0] sm:$0xff]
        %v371 = vld [vmem:[#allocation4 + $0xd8] sm:$0xff]
        %v372 = vld [vmem:[#allocation4 + $0xe0] sm:$0xff]
        %v373 = vld [vmem:[#allocation4 + $0xe8] sm:$0xff]
        %v374 = vld [vmem:[#allocation4 + $0xf0] sm:$0xff]
        %v375 = vld [vmem:[#allocation4 + $0xf8] sm:$0xff]
        %v376 = vld [vmem:[#allocation4 + $0x100] sm:$0xff]
        %v377 = vld [vmem:[#allocation4 + $0x108] sm:$0xff]
        %v378 = vld [vmem:[#allocation4 + $0x110] sm:$0xff]
        %v379 = vld [vmem:[#allocation4 + $0x118] sm:$0xff]
        %v380 = vld [vmem:[#allocation4 + $0x120] sm:$0xff]
        %v381 = vld [vmem:[#allocation4 + $0x128] sm:$0xff]
        %v382 = vld [vmem:[#allocation4 + $0x130] sm:$0xff]
        %v383 = vld [vmem:[#allocation4 + $0x138] sm:$0xff]
        %v384 = vld [vmem:[#allocation4 + $0x140] sm:$0xff]
        %v385 = vld [vmem:[#allocation4 + $0x148] sm:$0xff]
        %v386 = vld [vmem:[#allocation4 + $0x150] sm:$0xff]
        %v387 = vld [vmem:[#allocation4 + $0x158] sm:$0xff]
        %v388 = vld [vmem:[#allocation4 + $0x160] sm:$0xff]
        %v389 = vld [vmem:[#allocation4 + $0x168] sm:$0xff]
        %v390 = vld [vmem:[#allocation4 + $0x170] sm:$0xff]
        %v391 = vld [vmem:[#allocation4 + $0x178] sm:$0xff]
        %v392 = vld [vmem:[#allocation4 + $0x180] sm:$0xff]
        %v393 = vld [vmem:[#allocation4 + $0x188] sm:$0xff]
        %v394 = vld [vmem:[#allocation4 + $0x190] sm:$0xff]
        %v395 = vld [vmem:[#allocation4 + $0x198] sm:$0xff]
        %v396 = vld [vmem:[#allocation4 + $0x1a0] sm:$0xff]
        %v397 = vld [vmem:[#allocation4 + $0x1a8] sm:$0xff]
        %v398 = vld [vmem:[#allocation4 + $0x1b0] sm:$0xff]
        %v399 = vld [vmem:[#allocation4 + $0x1b8] sm:$0xff]
        %v400 = vld [vmem:[#allocation4 + $0x1c0] sm:$0xff]
        %v401 = vld [vmem:[#allocation4 + $0x1c8] sm:$0xff]
        %v402 = vld [vmem:[#allocation4 + $0x1d0] sm:$0xff]
        %v403 = vld [vmem:[#allocation4 + $0x1d8] sm:$0xff]
        %v404 = vld [vmem:[#allocation4 + $0x1e0] sm:$0xff]
        %v405 = vld [vmem:[#allocation4 + $0x1e8] sm:$0xff]
        %v406 = vld [vmem:[#allocation4 + $0x1f0] sm:$0xff]
        %v407 = vld [vmem:[#allocation4 + $0x1f8] sm:$0xff]
        %v408 = vld [vmem:[#allocation4 + $0x200] sm:$0xff]
        %v409 = vld [vmem:[#allocation4 + $0x208] sm:$0xff]
        %v410 = vld [vmem:[#allocation4 + $0x210] sm:$0xff]
        %v411 = vld [vmem:[#allocation4 + $0x218] sm:$0xff]
        %v412 = vld [vmem:[#allocation4 + $0x220] sm:$0xff]
        %v413 = vld [vmem:[#allocation4 + $0x228] sm:$0xff]
        %v414 = vld [vmem:[#allocation4 + $0x230] sm:$0xff]
        %v415 = vld [vmem:[#allocation4 + $0x238] sm:$0xff]
        %v416 = vld [vmem:[#allocation4 + $0x240] sm:$0xff]
        %v417 = vld [vmem:[#allocation4 + $0x248] sm:$0xff]
        %v418 = vld [vmem:[#allocation4 + $0x250] sm:$0xff]
        %v419 = vld [vmem:[#allocation4 + $0x258] sm:$0xff]
        %v420 = vld [vmem:[#allocation4 + $0x260] sm:$0xff]
        %v421 = vld [vmem:[#allocation4 + $0x268] sm:$0xff]
        %v422 = vld [vmem:[#allocation4 + $0x270] sm:$0xff]
        %v423 = vld [vmem:[#allocation4 + $0x278] sm:$0xff]
        %v424 = vld [vmem:[#allocation4 + $0x280] sm:$0xff]
        %v425 = vld [vmem:[#allocation4 + $0x288] sm:$0xff]
        %v426 = vld [vmem:[#allocation4 + $0x290] sm:$0xff]
        %v427 = vld [vmem:[#allocation4 + $0x298] sm:$0xff]
        %v428 = vld [vmem:[#allocation4 + $0x2a0] sm:$0xff]
        %v429 = vld [vmem:[#allocation4 + $0x2a8] sm:$0xff]
        %v430 = vld [vmem:[#allocation4 + $0x2b0] sm:$0xff]
        %v431 = vld [vmem:[#allocation4 + $0x2b8] sm:$0xff]
        %v432 = vld [vmem:[#allocation4 + $0x2c0] sm:$0xff]
        %v433 = vld [vmem:[#allocation4 + $0x2c8] sm:$0xff]
        %v434 = vld [vmem:[#allocation4 + $0x2d0] sm:$0xff]
        %v435 = vld [vmem:[#allocation4 + $0x2d8] sm:$0xff]
        %v436 = vld [vmem:[#allocation4 + $0x2e0] sm:$0xff]
        %v437 = vld [vmem:[#allocation4 + $0x2e8] sm:$0xff]
        %v438 = vld [vmem:[#allocation4 + $0x2f0] sm:$0xff]
        %v439 = vld [vmem:[#allocation4 + $0x2f8] sm:$0xff]
        %v440 = vld [vmem:[#allocation4 + $0x300] sm:$0xff]
        %v441 = vld [vmem:[#allocation4 + $0x308] sm:$0xff]
        %v442 = vld [vmem:[#allocation4 + $0x310] sm:$0xff]
        %v443 = vld [vmem:[#allocation4 + $0x318] sm:$0xff]
        %v444 = vld [vmem:[#allocation4 + $0x320] sm:$0xff]
        %v445 = vld [vmem:[#allocation4 + $0x328] sm:$0xff]
        %v446 = vld [vmem:[#allocation4 + $0x330] sm:$0xff]
        %v447 = vld [vmem:[#allocation4 + $0x338] sm:$0xff]
        %v448 = vld [vmem:[#allocation4 + $0x340] sm:$0xff]
        %v449 = vld [vmem:[#allocation4 + $0x348] sm:$0xff]
        %v450 = vld [vmem:[#allocation4 + $0x350] sm:$0xff]
        %v451 = vld [vmem:[#allocation4 + $0x358] sm:$0xff]
        %v452 = vld [vmem:[#allocation4 + $0x360] sm:$0xff]
        %v453 = vld [vmem:[#allocation4 + $0x368] sm:$0xff]
        %v454 = vld [vmem:[#allocation4 + $0x370] sm:$0xff]
        %v455 = vld [vmem:[#allocation4 + $0x378] sm:$0xff]
        %v456 = vld [vmem:[#allocation4 + $0x380] sm:$0xff]
        %v457 = vld [vmem:[#allocation4 + $0x388] sm:$0xff]
        %v458 = vld [vmem:[#allocation4 + $0x390] sm:$0xff]
        %v459 = vld [vmem:[#allocation4 + $0x398] sm:$0xff]
        %v460 = vld [vmem:[#allocation4 + $0x3a0] sm:$0xff]
        %v461 = vld [vmem:[#allocation4 + $0x3a8] sm:$0xff]
        %v462 = vld [vmem:[#allocation4 + $0x3b0] sm:$0xff]
        %v463 = vld [vmem:[#allocation4 + $0x3b8] sm:$0xff]
        %v464 = vld [vmem:[#allocation4 + $0x3c0] sm:$0xff]
        %v465 = vld [vmem:[#allocation4 + $0x3c8] sm:$0xff]
        %v466 = vld [vmem:[#allocation4 + $0x3d0] sm:$0xff]
        %v467 = vld [vmem:[#allocation4 + $0x3d8] sm:$0xff]
        %v468 = vld [vmem:[#allocation4 + $0x3e0] sm:$0xff]
        %v469 = vld [vmem:[#allocation4 + $0x3e8] sm:$0xff]
        %v470 = vld [vmem:[#allocation4 + $0x3f0] sm:$0xff]
        %v471 = vld [vmem:[#allocation4 + $0x3f8] sm:$0xff]
        %v472 = vld [vmem:[#allocation4 + $0x400] sm:$0xff]
        %v473 = vld [vmem:[#allocation4 + $0x408] sm:$0xff]
        %v474 = vld [vmem:[#allocation4 + $0x410] sm:$0xff]
        %v475 = vld [vmem:[#allocation4 + $0x418] sm:$0xff]
        %v476 = vld [vmem:[#allocation4 + $0x420] sm:$0xff]
        %v477 = vld [vmem:[#allocation4 + $0x428] sm:$0xff]
        %v478 = vld [vmem:[#allocation4 + $0x430] sm:$0xff]
        %v479 = vld [vmem:[#allocation4 + $0x438] sm:$0xff]
        %v480 = vld [vmem:[#allocation4 + $0x440] sm:$0xff]
        %v481 = vld [vmem:[#allocation4 + $0x448] sm:$0xff]
        %v482 = vld [vmem:[#allocation4 + $0x450] sm:$0xff]
        %v483 = vld [vmem:[#allocation4 + $0x458] sm:$0xff]
        %v484 = vld [vmem:[#allocation4 + $0x460] sm:$0xff]
        %v485 = vld [vmem:[#allocation4 + $0x468] sm:$0xff]
        %v486 = vld [vmem:[#allocation4 + $0x470] sm:$0xff]
        %v487 = vld [vmem:[#allocation4 + $0x478] sm:$0xff]
        %v488 = vld [vmem:[#allocation4 + $0x480] sm:$0xff]
        %v489 = vld [vmem:[#allocation4 + $0x488] sm:$0xff]
        %v490 = vld [vmem:[#allocation4 + $0x490] sm:$0xff]
        %v491 = vld [vmem:[#allocation4 + $0x498] sm:$0xff]
        %v492 = vld [vmem:[#allocation4 + $0x4a0] sm:$0xff]
        %v493 = vld [vmem:[#allocation4 + $0x4a8] sm:$0xff]
        %v494 = vld [vmem:[#allocation4 + $0x4b0] sm:$0xff]
        %v495 = vld [vmem:[#allocation4 + $0x4b8] sm:$0xff]
        %v496 = vld [vmem:[#allocation4 + $0x4c0] sm:$0xff]
        %v497 = vld [vmem:[#allocation4 + $0x4c8] sm:$0xff]
        %v498 = vld [vmem:[#allocation4 + $0x4d0] sm:$0xff]
        %v499 = vld [vmem:[#allocation4 + $0x4d8] sm:$0xff]
        %v500 = vld [vmem:[#allocation4 + $0x4e0] sm:$0xff]
        %v501 = vld [vmem:[#allocation4 + $0x4e8] sm:$0xff]
        %v502 = vld [vmem:[#allocation4 + $0x4f0] sm:$0xff]
        %v503 = vld [vmem:[#allocation4 + $0x4f8] sm:$0xff]
        %v504 = vld [vmem:[#allocation4 + $0x500] sm:$0xff]
        %v505 = vld [vmem:[#allocation4 + $0x508] sm:$0xff]
        %v506 = vld [vmem:[#allocation4 + $0x510] sm:$0xff]
        %v507 = vld [vmem:[#allocation4 + $0x518] sm:$0xff]
        %v508 = vld [vmem:[#allocation4 + $0x520] sm:$0xff]
        %v509 = vld [vmem:[#allocation4 + $0x528] sm:$0xff]
        %v510 = vld [vmem:[#allocation4 + $0x530] sm:$0xff]
        %v511 = vld [vmem:[#allocation4 + $0x538] sm:$0xff]
        %v512 = vld [vmem:[#allocation4 + $0x540] sm:$0xff]
        %v513 = vld [vmem:[#allocation4 + $0x548] sm:$0xff]
        %v514 = vld [vmem:[#allocation4 + $0x550] sm:$0xff]
        %v515 = vld [vmem:[#allocation4 + $0x558] sm:$0xff]
        %v516 = vld [vmem:[#allocation4 + $0x560] sm:$0xff]
        %v517 = vld [vmem:[#allocation4 + $0x568] sm:$0xff]
        %v518 = vld [vmem:[#allocation4 + $0x570] sm:$0xff]
        %v519 = vld [vmem:[#allocation4 + $0x578] sm:$0xff]
        %v520 = vld [vmem:[#allocation4 + $0x580] sm:$0xff]
        %v521 = vld [vmem:[#allocation4 + $0x588] sm:$0xff]
        %v522 = vld [vmem:[#allocation4 + $0x590] sm:$0xff]
        %v523 = vld [vmem:[#allocation4 + $0x598] sm:$0xff]
        %v524 = vld [vmem:[#allocation4 + $0x5a0] sm:$0xff]
        %v525 = vld [vmem:[#allocation4 + $0x5a8] sm:$0xff]
        %v526 = vld [vmem:[#allocation4 + $0x5b0] sm:$0xff]
        %v527 = vld [vmem:[#allocation4 + $0x5b8] sm:$0xff]
        %v528 = vld [vmem:[#allocation4 + $0x5c0] sm:$0xff]
        %v529 = vld [vmem:[#allocation4 + $0x5c8] sm:$0xff]
        %v530 = vld [vmem:[#allocation4 + $0x5d0] sm:$0xff]
        %v531 = vld [vmem:[#allocation4 + $0x5d8] sm:$0xff]
        %v532 = vld [vmem:[#allocation4 + $0x5e0] sm:$0xff]
        %v533 = vld [vmem:[#allocation4 + $0x5e8] sm:$0xff]
        %v534 = vld [vmem:[#allocation4 + $0x5f0] sm:$0xff]
        %v535 = vld [vmem:[#allocation4 + $0x5f8] sm:$0xff]
        %v536 = vld [vmem:[#allocation4 + $0x600] sm:$0xff]
        %v537 = vld [vmem:[#allocation4 + $0x608] sm:$0xff]
        %v538 = vld [vmem:[#allocation4 + $0x610] sm:$0xff]
        %v539 = vld [vmem:[#allocation4 + $0x618] sm:$0xff]
        %v540 = vld [vmem:[#allocation4 + $0x620] sm:$0xff]
        %v541 = vld [vmem:[#allocation4 + $0x628] sm:$0xff]
        %v542 = vld [vmem:[#allocation4 + $0x630] sm:$0xff]
        %v543 = vld [vmem:[#allocation4 + $0x638] sm:$0xff]
        %v544 = vld [vmem:[#allocation4 + $0x640] sm:$0xff]
        %v545 = vld [vmem:[#allocation4 + $0x648] sm:$0xff]
        %v546 = vld [vmem:[#allocation4 + $0x650] sm:$0xff]
        %v547 = vld [vmem:[#allocation4 + $0x658] sm:$0xff]
        %v548 = vld [vmem:[#allocation4 + $0x660] sm:$0xff]
        %v549 = vld [vmem:[#allocation4 + $0x668] sm:$0xff]
        %v550 = vld [vmem:[#allocation4 + $0x670] sm:$0xff]
        %v551 = vld [vmem:[#allocation4 + $0x678] sm:$0xff]
        %v552 = vld [vmem:[#allocation4 + $0x680] sm:$0xff]
        %v553 = vld [vmem:[#allocation4 + $0x688] sm:$0xff]
        %v554 = vld [vmem:[#allocation4 + $0x690] sm:$0xff]
        %v555 = vld [vmem:[#allocation4 + $0x698] sm:$0xff]
        %v556 = vld [vmem:[#allocation4 + $0x6a0] sm:$0xff]
        %v557 = vld [vmem:[#allocation4 + $0x6a8] sm:$0xff]
        %v558 = vld [vmem:[#allocation4 + $0x6b0] sm:$0xff]
        %v559 = vld [vmem:[#allocation4 + $0x6b8] sm:$0xff]
        %v560 = vld [vmem:[#allocation4 + $0x6c0] sm:$0xff]
        %v561 = vld [vmem:[#allocation4 + $0x6c8] sm:$0xff]
        %v562 = vld [vmem:[#allocation4 + $0x6d0] sm:$0xff]
        %v563 = vld [vmem:[#allocation4 + $0x6d8] sm:$0xff]
        %v564 = vld [vmem:[#allocation4 + $0x6e0] sm:$0xff]
        %v565 = vld [vmem:[#allocation4 + $0x6e8] sm:$0xff]
        %v566 = vld [vmem:[#allocation4 + $0x6f0] sm:$0xff]
        %v567 = vld [vmem:[#allocation4 + $0x6f8] sm:$0xff]
        %v568 = vld [vmem:[#allocation4 + $0x700] sm:$0xff]
        %v569 = vld [vmem:[#allocation4 + $0x708] sm:$0xff]
        %v570 = vld [vmem:[#allocation4 + $0x710] sm:$0xff]
        %v571 = vld [vmem:[#allocation4 + $0x718] sm:$0xff]
        %v572 = vld [vmem:[#allocation4 + $0x720] sm:$0xff]
        %v573 = vld [vmem:[#allocation4 + $0x728] sm:$0xff]
        %v574 = vld [vmem:[#allocation4 + $0x730] sm:$0xff]
        %v575 = vld [vmem:[#allocation4 + $0x738] sm:$0xff]
        %v576 = vld [vmem:[#allocation4 + $0x740] sm:$0xff]
        %v577 = vld [vmem:[#allocation4 + $0x748] sm:$0xff]
        %v578 = vld [vmem:[#allocation4 + $0x750] sm:$0xff]
        %v579 = vld [vmem:[#allocation4 + $0x758] sm:$0xff]
        %v580 = vld [vmem:[#allocation4 + $0x760] sm:$0xff]
        %v581 = vld [vmem:[#allocation4 + $0x768] sm:$0xff]
        %v582 = vld [vmem:[#allocation4 + $0x770] sm:$0xff]
        %v583 = vld [vmem:[#allocation4 + $0x778] sm:$0xff]
        %v584 = vld [vmem:[#allocation4 + $0x780] sm:$0xff]
        %v585 = vld [vmem:[#allocation4 + $0x788] sm:$0xff]
        %v586 = vld [vmem:[#allocation4 + $0x790] sm:$0xff]
        %v587 = vld [vmem:[#allocation4 + $0x798] sm:$0xff]
        %v588 = vld [vmem:[#allocation4 + $0x7a0] sm:$0xff]
        %v589 = vld [vmem:[#allocation4 + $0x7a8] sm:$0xff]
        %v590 = vld [vmem:[#allocation4 + $0x7b0] sm:$0xff]
        %v591 = vld [vmem:[#allocation4 + $0x7b8] sm:$0xff]
        %v592 = vld [vmem:[#allocation4 + $0x7c0] sm:$0xff]
        %v593 = vld [vmem:[#allocation4 + $0x7c8] sm:$0xff]
        %v594 = vld [vmem:[#allocation4 + $0x7d0] sm:$0xff]
        %v595 = vld [vmem:[#allocation4 + $0x7d8] sm:$0xff]
        %v596 = vld [vmem:[#allocation4 + $0x7e0] sm:$0xff]
        %v597 = vld [vmem:[#allocation4 + $0x7e8] sm:$0xff]
        %v598 = vld [vmem:[#allocation4 + $0x7f0] sm:$0xff]
        %v599 = vld [vmem:[#allocation4 + $0x7f8] sm:$0xff]
        %v600 = vld [vmem:[%s2] sm:$0xf]
        %v602 = vlaneseq
        %v603 = vshrl.u32 %v602, 7
        %v604 = vsub.s32 0, %v603
        %v605 = vrot.slane %v600, %v604
        %v606 = vlaneseq
        %v607 = vshrl.u32 %v606, 7
        %v608 = vsub.s32 1, %v607
        %v609 = vrot.slane %v600, %v608
        %v610 = vlaneseq
        %v611 = vshrl.u32 %v610, 7
        %v612 = vsub.s32 2, %v611
        %v613 = vrot.slane %v600, %v612
        %v614 = vlaneseq
        %v615 = vshrl.u32 %v614, 7
        %v616 = vsub.s32 3, %v615
        %v617 = vrot.slane %v600, %v616
        %v634 = vunpack.c.l.b16 %v332
        %v635 = vunpack.c.h.b16 %v332
        %v636 = vunpack.c.l.b16 %v333
        %v637 = vunpack.c.h.b16 %v333
        %v638 = vunpack.c.l.b16 %v334
        %v639 = vunpack.c.h.b16 %v334
        %v640 = vunpack.c.l.b16 %v335
        %v641 = vunpack.c.h.b16 %v335
        %v642 = vunpack.c.l.b16 %v336
        %v643 = vunpack.c.h.b16 %v336
        %v644 = vunpack.c.l.b16 %v337
        %v645 = vunpack.c.h.b16 %v337
        %v646 = vunpack.c.l.b16 %v338
        %v647 = vunpack.c.h.b16 %v338
        %v648 = vunpack.c.l.b16 %v339
        %v649 = vunpack.c.h.b16 %v339
        %v650 = vunpack.c.l.b16 %v340
        %v651 = vunpack.c.h.b16 %v340
        %v652 = vunpack.c.l.b16 %v341
        %v653 = vunpack.c.h.b16 %v341
        %v654 = vunpack.c.l.b16 %v342
        %v655 = vunpack.c.h.b16 %v342
        %v656 = vunpack.c.l.b16 %v343
        %v657 = vunpack.c.h.b16 %v343
        %v658 = vpack.c.b16 %v642, %v634
        %v659 = vpack.c.b16 %v643, %v635
        %v660 = vpack.c.b16 %v644, %v636
        %v661 = vpack.c.b16 %v645, %v637
        %v662 = vpack.c.b16 %v646, %v638
        %v663 = vpack.c.b16 %v647, %v639
        %v664 = vpack.c.b16 %v648, %v640
        %v665 = vpack.c.b16 %v649, %v641
        %v666 = vpack.c.b16 %v650, %v650
        %v667 = vpack.c.b16 %v651, %v651
        %v668 = vpack.c.b16 %v652, %v652
        %v669 = vpack.c.b16 %v653, %v653
        %v670 = vpack.c.b16 %v654, %v654
        %v671 = vpack.c.b16 %v655, %v655
        %v672 = vpack.c.b16 %v656, %v656
        %v673 = vpack.c.b16 %v657, %v657
        %v946 = vunpack.c.l.b16 %v344
        %v947 = vunpack.c.h.b16 %v344
        %v948 = vunpack.c.l.b16 %v345
        %v949 = vunpack.c.h.b16 %v345
        %v950 = vunpack.c.l.b16 %v346
        %v951 = vunpack.c.h.b16 %v346
        %v952 = vunpack.c.l.b16 %v347
        %v953 = vunpack.c.h.b16 %v347
        %v954 = vunpack.c.l.b16 %v348
        %v955 = vunpack.c.h.b16 %v348
        %v956 = vunpack.c.l.b16 %v349
        %v957 = vunpack.c.h.b16 %v349
        %v958 = vunpack.c.l.b16 %v350
        %v959 = vunpack.c.h.b16 %v350
        %v960 = vunpack.c.l.b16 %v351
        %v961 = vunpack.c.h.b16 %v351
        %v962 = vunpack.c.l.b16 %v352
        %v963 = vunpack.c.h.b16 %v352
        %v964 = vunpack.c.l.b16 %v353
        %v965 = vunpack.c.h.b16 %v353
        %v966 = vunpack.c.l.b16 %v354
        %v967 = vunpack.c.h.b16 %v354
        %v968 = vunpack.c.l.b16 %v355
        %v969 = vunpack.c.h.b16 %v355
        %v970 = vunpack.c.l.b16 %v356
        %v971 = vunpack.c.h.b16 %v356
        %v972 = vunpack.c.l.b16 %v357
        %v973 = vunpack.c.h.b16 %v357
        %v974 = vunpack.c.l.b16 %v358
        %v975 = vunpack.c.h.b16 %v358
        %v976 = vunpack.c.l.b16 %v359
        %v977 = vunpack.c.h.b16 %v359
        %v978 = vunpack.c.l.b16 %v360
        %v979 = vunpack.c.h.b16 %v360
        %v980 = vunpack.c.l.b16 %v361
        %v981 = vunpack.c.h.b16 %v361
        %v982 = vunpack.c.l.b16 %v362
        %v983 = vunpack.c.h.b16 %v362
        %v984 = vunpack.c.l.b16 %v363
        %v985 = vunpack.c.h.b16 %v363
        %v986 = vunpack.c.l.b16 %v364
        %v987 = vunpack.c.h.b16 %v364
        %v988 = vunpack.c.l.b16 %v365
        %v989 = vunpack.c.h.b16 %v365
        %v990 = vunpack.c.l.b16 %v366
        %v991 = vunpack.c.h.b16 %v366
        %v992 = vunpack.c.l.b16 %v367
        %v993 = vunpack.c.h.b16 %v367
        %v994 = vunpack.c.l.b16 %v368
        %v995 = vunpack.c.h.b16 %v368
        %v996 = vunpack.c.l.b16 %v369
        %v997 = vunpack.c.h.b16 %v369
        %v998 = vunpack.c.l.b16 %v370
        %v999 = vunpack.c.h.b16 %v370
        %v1000 = vunpack.c.l.b16 %v371
        %v1001 = vunpack.c.h.b16 %v371
        %v1002 = vunpack.c.l.b16 %v372
        %v1003 = vunpack.c.h.b16 %v372
        %v1004 = vunpack.c.l.b16 %v373
        %v1005 = vunpack.c.h.b16 %v373
        %v1006 = vunpack.c.l.b16 %v374
        %v1007 = vunpack.c.h.b16 %v374
        %v1008 = vunpack.c.l.b16 %v375
        %v1009 = vunpack.c.h.b16 %v375
        %v1010 = vunpack.c.l.b16 %v376
        %v1011 = vunpack.c.h.b16 %v376
        %v1012 = vunpack.c.l.b16 %v377
        %v1013 = vunpack.c.h.b16 %v377
        %v1014 = vunpack.c.l.b16 %v378
        %v1015 = vunpack.c.h.b16 %v378
        %v1016 = vunpack.c.l.b16 %v379
        %v1017 = vunpack.c.h.b16 %v379
        %v1018 = vunpack.c.l.b16 %v380
        %v1019 = vunpack.c.h.b16 %v380
        %v1020 = vunpack.c.l.b16 %v381
        %v1021 = vunpack.c.h.b16 %v381
        %v1022 = vunpack.c.l.b16 %v382
        %v1023 = vunpack.c.h.b16 %v382
        %v1024 = vunpack.c.l.b16 %v383
        %v1025 = vunpack.c.h.b16 %v383
        %v1026 = vunpack.c.l.b16 %v384
        %v1027 = vunpack.c.h.b16 %v384
        %v1028 = vunpack.c.l.b16 %v385
        %v1029 = vunpack.c.h.b16 %v385
        %v1030 = vunpack.c.l.b16 %v386
        %v1031 = vunpack.c.h.b16 %v386
        %v1032 = vunpack.c.l.b16 %v387
        %v1033 = vunpack.c.h.b16 %v387
        %v1034 = vunpack.c.l.b16 %v388
        %v1035 = vunpack.c.h.b16 %v388
        %v1036 = vunpack.c.l.b16 %v389
        %v1037 = vunpack.c.h.b16 %v389
        %v1038 = vunpack.c.l.b16 %v390
        %v1039 = vunpack.c.h.b16 %v390
        %v1040 = vunpack.c.l.b16 %v391
        %v1041 = vunpack.c.h.b16 %v391
        %v1042 = vunpack.c.l.b16 %v392
        %v1043 = vunpack.c.h.b16 %v392
        %v1044 = vunpack.c.l.b16 %v393
        %v1045 = vunpack.c.h.b16 %v393
        %v1046 = vunpack.c.l.b16 %v394
        %v1047 = vunpack.c.h.b16 %v394
        %v1048 = vunpack.c.l.b16 %v395
        %v1049 = vunpack.c.h.b16 %v395
        %v1050 = vunpack.c.l.b16 %v396
        %v1051 = vunpack.c.h.b16 %v396
        %v1052 = vunpack.c.l.b16 %v397
        %v1053 = vunpack.c.h.b16 %v397
        %v1054 = vunpack.c.l.b16 %v398
        %v1055 = vunpack.c.h.b16 %v398
        %v1056 = vunpack.c.l.b16 %v399
        %v1057 = vunpack.c.h.b16 %v399
        %v1058 = vunpack.c.l.b16 %v400
        %v1059 = vunpack.c.h.b16 %v400
        %v1060 = vunpack.c.l.b16 %v401
        %v1061 = vunpack.c.h.b16 %v401
        %v1062 = vunpack.c.l.b16 %v402
        %v1063 = vunpack.c.h.b16 %v402
        %v1064 = vunpack.c.l.b16 %v403
        %v1065 = vunpack.c.h.b16 %v403
        %v1066 = vunpack.c.l.b16 %v404
        %v1067 = vunpack.c.h.b16 %v404
        %v1068 = vunpack.c.l.b16 %v405
        %v1069 = vunpack.c.h.b16 %v405
        %v1070 = vunpack.c.l.b16 %v406
        %v1071 = vunpack.c.h.b16 %v406
        %v1072 = vunpack.c.l.b16 %v407
        %v1073 = vunpack.c.h.b16 %v407
        %v1074 = vunpack.c.l.b16 %v408
        %v1075 = vunpack.c.h.b16 %v408
        %v1076 = vunpack.c.l.b16 %v409
        %v1077 = vunpack.c.h.b16 %v409
        %v1078 = vunpack.c.l.b16 %v410
        %v1079 = vunpack.c.h.b16 %v410
        %v1080 = vunpack.c.l.b16 %v411
        %v1081 = vunpack.c.h.b16 %v411
        %v1082 = vunpack.c.l.b16 %v412
        %v1083 = vunpack.c.h.b16 %v412
        %v1084 = vunpack.c.l.b16 %v413
        %v1085 = vunpack.c.h.b16 %v413
        %v1086 = vunpack.c.l.b16 %v414
        %v1087 = vunpack.c.h.b16 %v414
        %v1088 = vunpack.c.l.b16 %v415
        %v1089 = vunpack.c.h.b16 %v415
        %v1090 = vunpack.c.l.b16 %v416
        %v1091 = vunpack.c.h.b16 %v416
        %v1092 = vunpack.c.l.b16 %v417
        %v1093 = vunpack.c.h.b16 %v417
        %v1094 = vunpack.c.l.b16 %v418
        %v1095 = vunpack.c.h.b16 %v418
        %v1096 = vunpack.c.l.b16 %v419
        %v1097 = vunpack.c.h.b16 %v419
        %v1098 = vunpack.c.l.b16 %v420
        %v1099 = vunpack.c.h.b16 %v420
        %v1100 = vunpack.c.l.b16 %v421
        %v1101 = vunpack.c.h.b16 %v421
        %v1102 = vunpack.c.l.b16 %v422
        %v1103 = vunpack.c.h.b16 %v422
        %v1104 = vunpack.c.l.b16 %v423
        %v1105 = vunpack.c.h.b16 %v423
        %v1106 = vunpack.c.l.b16 %v424
        %v1107 = vunpack.c.h.b16 %v424
        %v1108 = vunpack.c.l.b16 %v425
        %v1109 = vunpack.c.h.b16 %v425
        %v1110 = vunpack.c.l.b16 %v426
        %v1111 = vunpack.c.h.b16 %v426
        %v1112 = vunpack.c.l.b16 %v427
        %v1113 = vunpack.c.h.b16 %v427
        %v1114 = vunpack.c.l.b16 %v428
        %v1115 = vunpack.c.h.b16 %v428
        %v1116 = vunpack.c.l.b16 %v429
        %v1117 = vunpack.c.h.b16 %v429
        %v1118 = vunpack.c.l.b16 %v430
        %v1119 = vunpack.c.h.b16 %v430
        %v1120 = vunpack.c.l.b16 %v431
        %v1121 = vunpack.c.h.b16 %v431
        %v1122 = vunpack.c.l.b16 %v432
        %v1123 = vunpack.c.h.b16 %v432
        %v1124 = vunpack.c.l.b16 %v433
        %v1125 = vunpack.c.h.b16 %v433
        %v1126 = vunpack.c.l.b16 %v434
        %v1127 = vunpack.c.h.b16 %v434
        %v1128 = vunpack.c.l.b16 %v435
        %v1129 = vunpack.c.h.b16 %v435
        %v1130 = vunpack.c.l.b16 %v436
        %v1131 = vunpack.c.h.b16 %v436
        %v1132 = vunpack.c.l.b16 %v437
        %v1133 = vunpack.c.h.b16 %v437
        %v1134 = vunpack.c.l.b16 %v438
        %v1135 = vunpack.c.h.b16 %v438
        %v1136 = vunpack.c.l.b16 %v439
        %v1137 = vunpack.c.h.b16 %v439
        %v1138 = vunpack.c.l.b16 %v440
        %v1139 = vunpack.c.h.b16 %v440
        %v1140 = vunpack.c.l.b16 %v441
        %v1141 = vunpack.c.h.b16 %v441
        %v1142 = vunpack.c.l.b16 %v442
        %v1143 = vunpack.c.h.b16 %v442
        %v1144 = vunpack.c.l.b16 %v443
        %v1145 = vunpack.c.h.b16 %v443
        %v1146 = vunpack.c.l.b16 %v444
        %v1147 = vunpack.c.h.b16 %v444
        %v1148 = vunpack.c.l.b16 %v445
        %v1149 = vunpack.c.h.b16 %v445
        %v1150 = vunpack.c.l.b16 %v446
        %v1151 = vunpack.c.h.b16 %v446
        %v1152 = vunpack.c.l.b16 %v447
        %v1153 = vunpack.c.h.b16 %v447
        %v1154 = vunpack.c.l.b16 %v448
        %v1155 = vunpack.c.h.b16 %v448
        %v1156 = vunpack.c.l.b16 %v449
        %v1157 = vunpack.c.h.b16 %v449
        %v1158 = vunpack.c.l.b16 %v450
        %v1159 = vunpack.c.h.b16 %v450
        %v1160 = vunpack.c.l.b16 %v451
        %v1161 = vunpack.c.h.b16 %v451
        %v1162 = vunpack.c.l.b16 %v452
        %v1163 = vunpack.c.h.b16 %v452
        %v1164 = vunpack.c.l.b16 %v453
        %v1165 = vunpack.c.h.b16 %v453
        %v1166 = vunpack.c.l.b16 %v454
        %v1167 = vunpack.c.h.b16 %v454
        %v1168 = vunpack.c.l.b16 %v455
        %v1169 = vunpack.c.h.b16 %v455
        %v1170 = vunpack.c.l.b16 %v456
        %v1171 = vunpack.c.h.b16 %v456
        %v1172 = vunpack.c.l.b16 %v457
        %v1173 = vunpack.c.h.b16 %v457
        %v1174 = vunpack.c.l.b16 %v458
        %v1175 = vunpack.c.h.b16 %v458
        %v1176 = vunpack.c.l.b16 %v459
        %v1177 = vunpack.c.h.b16 %v459
        %v1178 = vunpack.c.l.b16 %v460
        %v1179 = vunpack.c.h.b16 %v460
        %v1180 = vunpack.c.l.b16 %v461
        %v1181 = vunpack.c.h.b16 %v461
        %v1182 = vunpack.c.l.b16 %v462
        %v1183 = vunpack.c.h.b16 %v462
        %v1184 = vunpack.c.l.b16 %v463
        %v1185 = vunpack.c.h.b16 %v463
        %v1186 = vunpack.c.l.b16 %v464
        %v1187 = vunpack.c.h.b16 %v464
        %v1188 = vunpack.c.l.b16 %v465
        %v1189 = vunpack.c.h.b16 %v465
        %v1190 = vunpack.c.l.b16 %v466
        %v1191 = vunpack.c.h.b16 %v466
        %v1192 = vunpack.c.l.b16 %v467
        %v1193 = vunpack.c.h.b16 %v467
        %v1194 = vunpack.c.l.b16 %v468
        %v1195 = vunpack.c.h.b16 %v468
        %v1196 = vunpack.c.l.b16 %v469
        %v1197 = vunpack.c.h.b16 %v469
        %v1198 = vunpack.c.l.b16 %v470
        %v1199 = vunpack.c.h.b16 %v470
        %v1200 = vunpack.c.l.b16 %v471
        %v1201 = vunpack.c.h.b16 %v471
        %v1202 = vunpack.c.l.b16 %v472
        %v1203 = vunpack.c.h.b16 %v472
        %v1204 = vunpack.c.l.b16 %v473
        %v1205 = vunpack.c.h.b16 %v473
        %v1206 = vunpack.c.l.b16 %v474
        %v1207 = vunpack.c.h.b16 %v474
        %v1208 = vunpack.c.l.b16 %v475
        %v1209 = vunpack.c.h.b16 %v475
        %v1210 = vunpack.c.l.b16 %v476
        %v1211 = vunpack.c.h.b16 %v476
        %v1212 = vunpack.c.l.b16 %v477
        %v1213 = vunpack.c.h.b16 %v477
        %v1214 = vunpack.c.l.b16 %v478
        %v1215 = vunpack.c.h.b16 %v478
        %v1216 = vunpack.c.l.b16 %v479
        %v1217 = vunpack.c.h.b16 %v479
        %v1218 = vunpack.c.l.b16 %v480
        %v1219 = vunpack.c.h.b16 %v480
        %v1220 = vunpack.c.l.b16 %v481
        %v1221 = vunpack.c.h.b16 %v481
        %v1222 = vunpack.c.l.b16 %v482
        %v1223 = vunpack.c.h.b16 %v482
        %v1224 = vunpack.c.l.b16 %v483
        %v1225 = vunpack.c.h.b16 %v483
        %v1226 = vunpack.c.l.b16 %v484
        %v1227 = vunpack.c.h.b16 %v484
        %v1228 = vunpack.c.l.b16 %v485
        %v1229 = vunpack.c.h.b16 %v485
        %v1230 = vunpack.c.l.b16 %v486
        %v1231 = vunpack.c.h.b16 %v486
        %v1232 = vunpack.c.l.b16 %v487
        %v1233 = vunpack.c.h.b16 %v487
        %v1234 = vunpack.c.l.b16 %v488
        %v1235 = vunpack.c.h.b16 %v488
        %v1236 = vunpack.c.l.b16 %v489
        %v1237 = vunpack.c.h.b16 %v489
        %v1238 = vunpack.c.l.b16 %v490
        %v1239 = vunpack.c.h.b16 %v490
        %v1240 = vunpack.c.l.b16 %v491
        %v1241 = vunpack.c.h.b16 %v491
        %v1242 = vunpack.c.l.b16 %v492
        %v1243 = vunpack.c.h.b16 %v492
        %v1244 = vunpack.c.l.b16 %v493
        %v1245 = vunpack.c.h.b16 %v493
        %v1246 = vunpack.c.l.b16 %v494
        %v1247 = vunpack.c.h.b16 %v494
        %v1248 = vunpack.c.l.b16 %v495
        %v1249 = vunpack.c.h.b16 %v495
        %v1250 = vunpack.c.l.b16 %v496
        %v1251 = vunpack.c.h.b16 %v496
        %v1252 = vunpack.c.l.b16 %v497
        %v1253 = vunpack.c.h.b16 %v497
        %v1254 = vunpack.c.l.b16 %v498
        %v1255 = vunpack.c.h.b16 %v498
        %v1256 = vunpack.c.l.b16 %v499
        %v1257 = vunpack.c.h.b16 %v499
        %v1258 = vunpack.c.l.b16 %v500
        %v1259 = vunpack.c.h.b16 %v500
        %v1260 = vunpack.c.l.b16 %v501
        %v1261 = vunpack.c.h.b16 %v501
        %v1262 = vunpack.c.l.b16 %v502
        %v1263 = vunpack.c.h.b16 %v502
        %v1264 = vunpack.c.l.b16 %v503
        %v1265 = vunpack.c.h.b16 %v503
        %v1266 = vunpack.c.l.b16 %v504
        %v1267 = vunpack.c.h.b16 %v504
        %v1268 = vunpack.c.l.b16 %v505
        %v1269 = vunpack.c.h.b16 %v505
        %v1270 = vunpack.c.l.b16 %v506
        %v1271 = vunpack.c.h.b16 %v506
        %v1272 = vunpack.c.l.b16 %v507
        %v1273 = vunpack.c.h.b16 %v507
        %v1274 = vunpack.c.l.b16 %v508
        %v1275 = vunpack.c.h.b16 %v508
        %v1276 = vunpack.c.l.b16 %v509
        %v1277 = vunpack.c.h.b16 %v509
        %v1278 = vunpack.c.l.b16 %v510
        %v1279 = vunpack.c.h.b16 %v510
        %v1280 = vunpack.c.l.b16 %v511
        %v1281 = vunpack.c.h.b16 %v511
        %v1282 = vunpack.c.l.b16 %v512
        %v1283 = vunpack.c.h.b16 %v512
        %v1284 = vunpack.c.l.b16 %v513
        %v1285 = vunpack.c.h.b16 %v513
        %v1286 = vunpack.c.l.b16 %v514
        %v1287 = vunpack.c.h.b16 %v514
        %v1288 = vunpack.c.l.b16 %v515
        %v1289 = vunpack.c.h.b16 %v515
        %v1290 = vunpack.c.l.b16 %v516
        %v1291 = vunpack.c.h.b16 %v516
        %v1292 = vunpack.c.l.b16 %v517
        %v1293 = vunpack.c.h.b16 %v517
        %v1294 = vunpack.c.l.b16 %v518
        %v1295 = vunpack.c.h.b16 %v518
        %v1296 = vunpack.c.l.b16 %v519
        %v1297 = vunpack.c.h.b16 %v519
        %v1298 = vunpack.c.l.b16 %v520
        %v1299 = vunpack.c.h.b16 %v520
        %v1300 = vunpack.c.l.b16 %v521
        %v1301 = vunpack.c.h.b16 %v521
        %v1302 = vunpack.c.l.b16 %v522
        %v1303 = vunpack.c.h.b16 %v522
        %v1304 = vunpack.c.l.b16 %v523
        %v1305 = vunpack.c.h.b16 %v523
        %v1306 = vunpack.c.l.b16 %v524
        %v1307 = vunpack.c.h.b16 %v524
        %v1308 = vunpack.c.l.b16 %v525
        %v1309 = vunpack.c.h.b16 %v525
        %v1310 = vunpack.c.l.b16 %v526
        %v1311 = vunpack.c.h.b16 %v526
        %v1312 = vunpack.c.l.b16 %v527
        %v1313 = vunpack.c.h.b16 %v527
        %v1314 = vunpack.c.l.b16 %v528
        %v1315 = vunpack.c.h.b16 %v528
        %v1316 = vunpack.c.l.b16 %v529
        %v1317 = vunpack.c.h.b16 %v529
        %v1318 = vunpack.c.l.b16 %v530
        %v1319 = vunpack.c.h.b16 %v530
        %v1320 = vunpack.c.l.b16 %v531
        %v1321 = vunpack.c.h.b16 %v531
        %v1322 = vunpack.c.l.b16 %v532
        %v1323 = vunpack.c.h.b16 %v532
        %v1324 = vunpack.c.l.b16 %v533
        %v1325 = vunpack.c.h.b16 %v533
        %v1326 = vunpack.c.l.b16 %v534
        %v1327 = vunpack.c.h.b16 %v534
        %v1328 = vunpack.c.l.b16 %v535
        %v1329 = vunpack.c.h.b16 %v535
        %v1330 = vunpack.c.l.b16 %v536
        %v1331 = vunpack.c.h.b16 %v536
        %v1332 = vunpack.c.l.b16 %v537
        %v1333 = vunpack.c.h.b16 %v537
        %v1334 = vunpack.c.l.b16 %v538
        %v1335 = vunpack.c.h.b16 %v538
        %v1336 = vunpack.c.l.b16 %v539
        %v1337 = vunpack.c.h.b16 %v539
        %v1338 = vunpack.c.l.b16 %v540
        %v1339 = vunpack.c.h.b16 %v540
        %v1340 = vunpack.c.l.b16 %v541
        %v1341 = vunpack.c.h.b16 %v541
        %v1342 = vunpack.c.l.b16 %v542
        %v1343 = vunpack.c.h.b16 %v542
        %v1344 = vunpack.c.l.b16 %v543
        %v1345 = vunpack.c.h.b16 %v543
        %v1346 = vunpack.c.l.b16 %v544
        %v1347 = vunpack.c.h.b16 %v544
        %v1348 = vunpack.c.l.b16 %v545
        %v1349 = vunpack.c.h.b16 %v545
        %v1350 = vunpack.c.l.b16 %v546
        %v1351 = vunpack.c.h.b16 %v546
        %v1352 = vunpack.c.l.b16 %v547
        %v1353 = vunpack.c.h.b16 %v547
        %v1354 = vunpack.c.l.b16 %v548
        %v1355 = vunpack.c.h.b16 %v548
        %v1356 = vunpack.c.l.b16 %v549
        %v1357 = vunpack.c.h.b16 %v549
        %v1358 = vunpack.c.l.b16 %v550
        %v1359 = vunpack.c.h.b16 %v550
        %v1360 = vunpack.c.l.b16 %v551
        %v1361 = vunpack.c.h.b16 %v551
        %v1362 = vunpack.c.l.b16 %v552
        %v1363 = vunpack.c.h.b16 %v552
        %v1364 = vunpack.c.l.b16 %v553
        %v1365 = vunpack.c.h.b16 %v553
        %v1366 = vunpack.c.l.b16 %v554
        %v1367 = vunpack.c.h.b16 %v554
        %v1368 = vunpack.c.l.b16 %v555
        %v1369 = vunpack.c.h.b16 %v555
        %v1370 = vunpack.c.l.b16 %v556
        %v1371 = vunpack.c.h.b16 %v556
        %v1372 = vunpack.c.l.b16 %v557
        %v1373 = vunpack.c.h.b16 %v557
        %v1374 = vunpack.c.l.b16 %v558
        %v1375 = vunpack.c.h.b16 %v558
        %v1376 = vunpack.c.l.b16 %v559
        %v1377 = vunpack.c.h.b16 %v559
        %v1378 = vunpack.c.l.b16 %v560
        %v1379 = vunpack.c.h.b16 %v560
        %v1380 = vunpack.c.l.b16 %v561
        %v1381 = vunpack.c.h.b16 %v561
        %v1382 = vunpack.c.l.b16 %v562
        %v1383 = vunpack.c.h.b16 %v562
        %v1384 = vunpack.c.l.b16 %v563
        %v1385 = vunpack.c.h.b16 %v563
        %v1386 = vunpack.c.l.b16 %v564
        %v1387 = vunpack.c.h.b16 %v564
        %v1388 = vunpack.c.l.b16 %v565
        %v1389 = vunpack.c.h.b16 %v565
        %v1390 = vunpack.c.l.b16 %v566
        %v1391 = vunpack.c.h.b16 %v566
        %v1392 = vunpack.c.l.b16 %v567
        %v1393 = vunpack.c.h.b16 %v567
        %v1394 = vunpack.c.l.b16 %v568
        %v1395 = vunpack.c.h.b16 %v568
        %v1396 = vunpack.c.l.b16 %v569
        %v1397 = vunpack.c.h.b16 %v569
        %v1398 = vunpack.c.l.b16 %v570
        %v1399 = vunpack.c.h.b16 %v570
        %v1400 = vunpack.c.l.b16 %v571
        %v1401 = vunpack.c.h.b16 %v571
        %v1402 = vunpack.c.l.b16 %v572
        %v1403 = vunpack.c.h.b16 %v572
        %v1404 = vunpack.c.l.b16 %v573
        %v1405 = vunpack.c.h.b16 %v573
        %v1406 = vunpack.c.l.b16 %v574
        %v1407 = vunpack.c.h.b16 %v574
        %v1408 = vunpack.c.l.b16 %v575
        %v1409 = vunpack.c.h.b16 %v575
        %v1410 = vunpack.c.l.b16 %v576
        %v1411 = vunpack.c.h.b16 %v576
        %v1412 = vunpack.c.l.b16 %v577
        %v1413 = vunpack.c.h.b16 %v577
        %v1414 = vunpack.c.l.b16 %v578
        %v1415 = vunpack.c.h.b16 %v578
        %v1416 = vunpack.c.l.b16 %v579
        %v1417 = vunpack.c.h.b16 %v579
        %v1418 = vunpack.c.l.b16 %v580
        %v1419 = vunpack.c.h.b16 %v580
        %v1420 = vunpack.c.l.b16 %v581
        %v1421 = vunpack.c.h.b16 %v581
        %v1422 = vunpack.c.l.b16 %v582
        %v1423 = vunpack.c.h.b16 %v582
        %v1424 = vunpack.c.l.b16 %v583
        %v1425 = vunpack.c.h.b16 %v583
        %v1426 = vunpack.c.l.b16 %v584
        %v1427 = vunpack.c.h.b16 %v584
        %v1428 = vunpack.c.l.b16 %v585
        %v1429 = vunpack.c.h.b16 %v585
        %v1430 = vunpack.c.l.b16 %v586
        %v1431 = vunpack.c.h.b16 %v586
        %v1432 = vunpack.c.l.b16 %v587
        %v1433 = vunpack.c.h.b16 %v587
        %v1434 = vunpack.c.l.b16 %v588
        %v1435 = vunpack.c.h.b16 %v588
        %v1436 = vunpack.c.l.b16 %v589
        %v1437 = vunpack.c.h.b16 %v589
        %v1438 = vunpack.c.l.b16 %v590
        %v1439 = vunpack.c.h.b16 %v590
        %v1440 = vunpack.c.l.b16 %v591
        %v1441 = vunpack.c.h.b16 %v591
        %v1442 = vunpack.c.l.b16 %v592
        %v1443 = vunpack.c.h.b16 %v592
        %v1444 = vunpack.c.l.b16 %v593
        %v1445 = vunpack.c.h.b16 %v593
        %v1446 = vunpack.c.l.b16 %v594
        %v1447 = vunpack.c.h.b16 %v594
        %v1448 = vunpack.c.l.b16 %v595
        %v1449 = vunpack.c.h.b16 %v595
        %v1450 = vunpack.c.l.b16 %v596
        %v1451 = vunpack.c.h.b16 %v596
        %v1452 = vunpack.c.l.b16 %v597
        %v1453 = vunpack.c.h.b16 %v597
        %v1454 = vunpack.c.l.b16 %v598
        %v1455 = vunpack.c.h.b16 %v598
        %v1456 = vunpack.c.l.b16 %v599
        %v1457 = vunpack.c.h.b16 %v599
        %v1458 = vpack.c.b16 %v950, %v946
        %v1459 = vpack.c.b16 %v951, %v947
        %v1460 = vpack.c.b16 %v952, %v948
        %v1461 = vpack.c.b16 %v953, %v949
        %v1462 = vpack.c.b16 %v958, %v954
        %v1463 = vpack.c.b16 %v959, %v955
        %v1464 = vpack.c.b16 %v960, %v956
        %v1465 = vpack.c.b16 %v961, %v957
        %v1466 = vpack.c.b16 %v966, %v962
        %v1467 = vpack.c.b16 %v967, %v963
        %v1468 = vpack.c.b16 %v968, %v964
        %v1469 = vpack.c.b16 %v969, %v965
        %v1470 = vpack.c.b16 %v974, %v970
        %v1471 = vpack.c.b16 %v975, %v971
        %v1472 = vpack.c.b16 %v976, %v972
        %v1473 = vpack.c.b16 %v977, %v973
        %v1474 = vpack.c.b16 %v982, %v978
        %v1475 = vpack.c.b16 %v983, %v979
        %v1476 = vpack.c.b16 %v984, %v980
        %v1477 = vpack.c.b16 %v985, %v981
        %v1478 = vpack.c.b16 %v990, %v986
        %v1479 = vpack.c.b16 %v991, %v987
        %v1480 = vpack.c.b16 %v992, %v988
        %v1481 = vpack.c.b16 %v993, %v989
        %v1482 = vpack.c.b16 %v998, %v994
        %v1483 = vpack.c.b16 %v999, %v995
        %v1484 = vpack.c.b16 %v1000, %v996
        %v1485 = vpack.c.b16 %v1001, %v997
        %v1486 = vpack.c.b16 %v1006, %v1002
        %v1487 = vpack.c.b16 %v1007, %v1003
        %v1488 = vpack.c.b16 %v1008, %v1004
        %v1489 = vpack.c.b16 %v1009, %v1005
        %v1490 = vpack.c.b16 %v1014, %v1010
        %v1491 = vpack.c.b16 %v1015, %v1011
        %v1492 = vpack.c.b16 %v1016, %v1012
        %v1493 = vpack.c.b16 %v1017, %v1013
        %v1494 = vpack.c.b16 %v1022, %v1018
        %v1495 = vpack.c.b16 %v1023, %v1019
        %v1496 = vpack.c.b16 %v1024, %v1020
        %v1497 = vpack.c.b16 %v1025, %v1021
        %v1498 = vpack.c.b16 %v1030, %v1026
        %v1499 = vpack.c.b16 %v1031, %v1027
        %v1500 = vpack.c.b16 %v1032, %v1028
        %v1501 = vpack.c.b16 %v1033, %v1029
        %v1502 = vpack.c.b16 %v1038, %v1034
        %v1503 = vpack.c.b16 %v1039, %v1035
        %v1504 = vpack.c.b16 %v1040, %v1036
        %v1505 = vpack.c.b16 %v1041, %v1037
        %v1506 = vpack.c.b16 %v1046, %v1042
        %v1507 = vpack.c.b16 %v1047, %v1043
        %v1508 = vpack.c.b16 %v1048, %v1044
        %v1509 = vpack.c.b16 %v1049, %v1045
        %v1510 = vpack.c.b16 %v1054, %v1050
        %v1511 = vpack.c.b16 %v1055, %v1051
        %v1512 = vpack.c.b16 %v1056, %v1052
        %v1513 = vpack.c.b16 %v1057, %v1053
        %v1514 = vpack.c.b16 %v1062, %v1058
        %v1515 = vpack.c.b16 %v1063, %v1059
        %v1516 = vpack.c.b16 %v1064, %v1060
        %v1517 = vpack.c.b16 %v1065, %v1061
        %v1518 = vpack.c.b16 %v1070, %v1066
        %v1519 = vpack.c.b16 %v1071, %v1067
        %v1520 = vpack.c.b16 %v1072, %v1068
        %v1521 = vpack.c.b16 %v1073, %v1069
        %v1522 = vpack.c.b16 %v1078, %v1074
        %v1523 = vpack.c.b16 %v1079, %v1075
        %v1524 = vpack.c.b16 %v1080, %v1076
        %v1525 = vpack.c.b16 %v1081, %v1077
        %v1526 = vpack.c.b16 %v1086, %v1082
        %v1527 = vpack.c.b16 %v1087, %v1083
        %v1528 = vpack.c.b16 %v1088, %v1084
        %v1529 = vpack.c.b16 %v1089, %v1085
        %v1530 = vpack.c.b16 %v1094, %v1090
        %v1531 = vpack.c.b16 %v1095, %v1091
        %v1532 = vpack.c.b16 %v1096, %v1092
        %v1533 = vpack.c.b16 %v1097, %v1093
        %v1534 = vpack.c.b16 %v1102, %v1098
        %v1535 = vpack.c.b16 %v1103, %v1099
        %v1536 = vpack.c.b16 %v1104, %v1100
        %v1537 = vpack.c.b16 %v1105, %v1101
        %v1538 = vpack.c.b16 %v1110, %v1106
        %v1539 = vpack.c.b16 %v1111, %v1107
        %v1540 = vpack.c.b16 %v1112, %v1108
        %v1541 = vpack.c.b16 %v1113, %v1109
        %v1542 = vpack.c.b16 %v1118, %v1114
        %v1543 = vpack.c.b16 %v1119, %v1115
        %v1544 = vpack.c.b16 %v1120, %v1116
        %v1545 = vpack.c.b16 %v1121, %v1117
        %v1546 = vpack.c.b16 %v1126, %v1122
        %v1547 = vpack.c.b16 %v1127, %v1123
        %v1548 = vpack.c.b16 %v1128, %v1124
        %v1549 = vpack.c.b16 %v1129, %v1125
        %v1550 = vpack.c.b16 %v1134, %v1130
        %v1551 = vpack.c.b16 %v1135, %v1131
        %v1552 = vpack.c.b16 %v1136, %v1132
        %v1553 = vpack.c.b16 %v1137, %v1133
        %v1554 = vpack.c.b16 %v1142, %v1138
        %v1555 = vpack.c.b16 %v1143, %v1139
        %v1556 = vpack.c.b16 %v1144, %v1140
        %v1557 = vpack.c.b16 %v1145, %v1141
        %v1558 = vpack.c.b16 %v1150, %v1146
        %v1559 = vpack.c.b16 %v1151, %v1147
        %v1560 = vpack.c.b16 %v1152, %v1148
        %v1561 = vpack.c.b16 %v1153, %v1149
        %v1562 = vpack.c.b16 %v1158, %v1154
        %v1563 = vpack.c.b16 %v1159, %v1155
        %v1564 = vpack.c.b16 %v1160, %v1156
        %v1565 = vpack.c.b16 %v1161, %v1157
        %v1566 = vpack.c.b16 %v1166, %v1162
        %v1567 = vpack.c.b16 %v1167, %v1163
        %v1568 = vpack.c.b16 %v1168, %v1164
        %v1569 = vpack.c.b16 %v1169, %v1165
        %v1570 = vpack.c.b16 %v1174, %v1170
        %v1571 = vpack.c.b16 %v1175, %v1171
        %v1572 = vpack.c.b16 %v1176, %v1172
        %v1573 = vpack.c.b16 %v1177, %v1173
        %v1574 = vpack.c.b16 %v1182, %v1178
        %v1575 = vpack.c.b16 %v1183, %v1179
        %v1576 = vpack.c.b16 %v1184, %v1180
        %v1577 = vpack.c.b16 %v1185, %v1181
        %v1578 = vpack.c.b16 %v1190, %v1186
        %v1579 = vpack.c.b16 %v1191, %v1187
        %v1580 = vpack.c.b16 %v1192, %v1188
        %v1581 = vpack.c.b16 %v1193, %v1189
        %v1582 = vpack.c.b16 %v1198, %v1194
        %v1583 = vpack.c.b16 %v1199, %v1195
        %v1584 = vpack.c.b16 %v1200, %v1196
        %v1585 = vpack.c.b16 %v1201, %v1197
        %v1586 = vpack.c.b16 %v1206, %v1202
        %v1587 = vpack.c.b16 %v1207, %v1203
        %v1588 = vpack.c.b16 %v1208, %v1204
        %v1589 = vpack.c.b16 %v1209, %v1205
        %v1590 = vpack.c.b16 %v1214, %v1210
        %v1591 = vpack.c.b16 %v1215, %v1211
        %v1592 = vpack.c.b16 %v1216, %v1212
        %v1593 = vpack.c.b16 %v1217, %v1213
        %v1594 = vpack.c.b16 %v1222, %v1218
        %v1595 = vpack.c.b16 %v1223, %v1219
        %v1596 = vpack.c.b16 %v1224, %v1220
        %v1597 = vpack.c.b16 %v1225, %v1221
        %v1598 = vpack.c.b16 %v1230, %v1226
        %v1599 = vpack.c.b16 %v1231, %v1227
        %v1600 = vpack.c.b16 %v1232, %v1228
        %v1601 = vpack.c.b16 %v1233, %v1229
        %v1602 = vpack.c.b16 %v1238, %v1234
        %v1603 = vpack.c.b16 %v1239, %v1235
        %v1604 = vpack.c.b16 %v1240, %v1236
        %v1605 = vpack.c.b16 %v1241, %v1237
        %v1606 = vpack.c.b16 %v1246, %v1242
        %v1607 = vpack.c.b16 %v1247, %v1243
        %v1608 = vpack.c.b16 %v1248, %v1244
        %v1609 = vpack.c.b16 %v1249, %v1245
        %v1610 = vpack.c.b16 %v1254, %v1250
        %v1611 = vpack.c.b16 %v1255, %v1251
        %v1612 = vpack.c.b16 %v1256, %v1252
        %v1613 = vpack.c.b16 %v1257, %v1253
        %v1614 = vpack.c.b16 %v1262, %v1258
        %v1615 = vpack.c.b16 %v1263, %v1259
        %v1616 = vpack.c.b16 %v1264, %v1260
        %v1617 = vpack.c.b16 %v1265, %v1261
        %v1618 = vpack.c.b16 %v1270, %v1266
        %v1619 = vpack.c.b16 %v1271, %v1267
        %v1620 = vpack.c.b16 %v1272, %v1268
        %v1621 = vpack.c.b16 %v1273, %v1269
        %v1622 = vpack.c.b16 %v1278, %v1274
        %v1623 = vpack.c.b16 %v1279, %v1275
        %v1624 = vpack.c.b16 %v1280, %v1276
        %v1625 = vpack.c.b16 %v1281, %v1277
        %v1626 = vpack.c.b16 %v1286, %v1282
        %v1627 = vpack.c.b16 %v1287, %v1283
        %v1628 = vpack.c.b16 %v1288, %v1284
        %v1629 = vpack.c.b16 %v1289, %v1285
        %v1630 = vpack.c.b16 %v1294, %v1290
        %v1631 = vpack.c.b16 %v1295, %v1291
        %v1632 = vpack.c.b16 %v1296, %v1292
        %v1633 = vpack.c.b16 %v1297, %v1293
        %v1634 = vpack.c.b16 %v1302, %v1298
        %v1635 = vpack.c.b16 %v1303, %v1299
        %v1636 = vpack.c.b16 %v1304, %v1300
        %v1637 = vpack.c.b16 %v1305, %v1301
        %v1638 = vpack.c.b16 %v1310, %v1306
        %v1639 = vpack.c.b16 %v1311, %v1307
        %v1640 = vpack.c.b16 %v1312, %v1308
        %v1641 = vpack.c.b16 %v1313, %v1309
        %v1642 = vpack.c.b16 %v1318, %v1314
        %v1643 = vpack.c.b16 %v1319, %v1315
        %v1644 = vpack.c.b16 %v1320, %v1316
        %v1645 = vpack.c.b16 %v1321, %v1317
        %v1646 = vpack.c.b16 %v1326, %v1322
        %v1647 = vpack.c.b16 %v1327, %v1323
        %v1648 = vpack.c.b16 %v1328, %v1324
        %v1649 = vpack.c.b16 %v1329, %v1325
        %v1650 = vpack.c.b16 %v1334, %v1330
        %v1651 = vpack.c.b16 %v1335, %v1331
        %v1652 = vpack.c.b16 %v1336, %v1332
        %v1653 = vpack.c.b16 %v1337, %v1333
        %v1654 = vpack.c.b16 %v1342, %v1338
        %v1655 = vpack.c.b16 %v1343, %v1339
        %v1656 = vpack.c.b16 %v1344, %v1340
        %v1657 = vpack.c.b16 %v1345, %v1341
        %v1658 = vpack.c.b16 %v1350, %v1346
        %v1659 = vpack.c.b16 %v1351, %v1347
        %v1660 = vpack.c.b16 %v1352, %v1348
        %v1661 = vpack.c.b16 %v1353, %v1349
        %v1662 = vpack.c.b16 %v1358, %v1354
        %v1663 = vpack.c.b16 %v1359, %v1355
        %v1664 = vpack.c.b16 %v1360, %v1356
        %v1665 = vpack.c.b16 %v1361, %v1357
        %v1666 = vpack.c.b16 %v1366, %v1362
        %v1667 = vpack.c.b16 %v1367, %v1363
        %v1668 = vpack.c.b16 %v1368, %v1364
        %v1669 = vpack.c.b16 %v1369, %v1365
        %v1670 = vpack.c.b16 %v1374, %v1370
        %v1671 = vpack.c.b16 %v1375, %v1371
        %v1672 = vpack.c.b16 %v1376, %v1372
        %v1673 = vpack.c.b16 %v1377, %v1373
        %v1674 = vpack.c.b16 %v1382, %v1378
        %v1675 = vpack.c.b16 %v1383, %v1379
        %v1676 = vpack.c.b16 %v1384, %v1380
        %v1677 = vpack.c.b16 %v1385, %v1381
        %v1678 = vpack.c.b16 %v1390, %v1386
        %v1679 = vpack.c.b16 %v1391, %v1387
        %v1680 = vpack.c.b16 %v1392, %v1388
        %v1681 = vpack.c.b16 %v1393, %v1389
        %v1682 = vpack.c.b16 %v1398, %v1394
        %v1683 = vpack.c.b16 %v1399, %v1395
        %v1684 = vpack.c.b16 %v1400, %v1396
        %v1685 = vpack.c.b16 %v1401, %v1397
        %v1686 = vpack.c.b16 %v1406, %v1402
        %v1687 = vpack.c.b16 %v1407, %v1403
        %v1688 = vpack.c.b16 %v1408, %v1404
        %v1689 = vpack.c.b16 %v1409, %v1405
        %v1690 = vpack.c.b16 %v1414, %v1410
        %v1691 = vpack.c.b16 %v1415, %v1411
        %v1692 = vpack.c.b16 %v1416, %v1412
        %v1693 = vpack.c.b16 %v1417, %v1413
        %v1694 = vpack.c.b16 %v1422, %v1418
        %v1695 = vpack.c.b16 %v1423, %v1419
        %v1696 = vpack.c.b16 %v1424, %v1420
        %v1697 = vpack.c.b16 %v1425, %v1421
        %v1698 = vpack.c.b16 %v1430, %v1426
        %v1699 = vpack.c.b16 %v1431, %v1427
        %v1700 = vpack.c.b16 %v1432, %v1428
        %v1701 = vpack.c.b16 %v1433, %v1429
        %v1702 = vpack.c.b16 %v1438, %v1434
        %v1703 = vpack.c.b16 %v1439, %v1435
        %v1704 = vpack.c.b16 %v1440, %v1436
        %v1705 = vpack.c.b16 %v1441, %v1437
        %v1706 = vpack.c.b16 %v1446, %v1442
        %v1707 = vpack.c.b16 %v1447, %v1443
        %v1708 = vpack.c.b16 %v1448, %v1444
        %v1709 = vpack.c.b16 %v1449, %v1445
        %v1710 = vpack.c.b16 %v1454, %v1450
        %v1711 = vpack.c.b16 %v1455, %v1451
        %v1712 = vpack.c.b16 %v1456, %v1452
        %v1713 = vpack.c.b16 %v1457, %v1453
        %1970 = vmatprep.subr.bf16.mxu0 %v1487
        %1971 = vmatpush1.bf16.msra.mxu0 %v1486
        %1972 = vmatprep.subr.bf16.mxu0 %v1483
        %1973 = vmatpush1.bf16.msra.mxu0 %v1482
        %1974 = vmatprep.subr.bf16.mxu0 %v1479
        %1975 = vmatpush1.bf16.msra.mxu0 %v1478
        %1976 = vmatprep.subr.bf16.mxu0 %v1475
        %1977 = vmatpush1.bf16.msra.mxu0 %v1474
        %1978 = vmatprep.subr.bf16.mxu0 %v1471
        %1979 = vmatpush1.bf16.msra.mxu0 %v1470
        %1980 = vmatprep.subr.bf16.mxu0 %v1467
        %1981 = vmatpush1.bf16.msra.mxu0 %v1466
        %1982 = vmatprep.subr.bf16.mxu0 %v1463
        %1983 = vmatpush1.bf16.msra.mxu0 %v1462
        %1984 = vmatprep.subr.bf16.mxu0 %v1459
        %1985 = vmatpush1.bf16.msra.mxu0 %v1458
        %1986 = vmatprep.subr.bf16.mxu0 %v1519
        %1987 = vmatpush2.bf16.msra.mxu0 %v1518
        %1988 = vmatprep.subr.bf16.mxu0 %v1515
        %1989 = vmatpush2.bf16.msra.mxu0 %v1514
        %1990 = vmatprep.subr.bf16.mxu0 %v1511
        %1991 = vmatpush2.bf16.msra.mxu0 %v1510
        %1992 = vmatprep.subr.bf16.mxu0 %v1507
        %1993 = vmatpush2.bf16.msra.mxu0 %v1506
        %1994 = vmatprep.subr.bf16.mxu0 %v1503
        %1995 = vmatpush2.bf16.msra.mxu0 %v1502
        %1996 = vmatprep.subr.bf16.mxu0 %v1499
        %1997 = vmatpush2.bf16.msra.mxu0 %v1498
        %1998 = vmatprep.subr.bf16.mxu0 %v1495
        %1999 = vmatpush2.bf16.msra.mxu0 %v1494
        %2000 = vmatprep.subr.bf16.mxu0 %v1491
        %2001 = vmatpush2.bf16.msra.mxu0 %v1490
        %2002 = vmatprep.mubr.bf16.mxu0 %v659
        %2003 = vmatmul.mubr.bf16.gmra.mxu0 %v658
        %v2004 = vpop.f32.mrf.mxu0
        %v2005 = vadd.f32 %v605, %v2004
        %v2006 = vpop.f32.mrf.mxu0
        %v2007 = vadd.f32 %v609, %v2006
        %v2008 = vpop.f32.mrf.mxu0
        %v2009 = vadd.f32 %v605, %v2008
        %v2010 = vpop.f32.mrf.mxu0
        %v2011 = vadd.f32 %v609, %v2010
        %2012 = vmatprep.mubr.bf16.mxu0 %v667
        %2013 = vmatmul.mubr.bf16.gmra.mxu0 %v666
        %v2014 = vpop.f32.mrf.mxu0
        %v2015 = vadd.f32 %v605, %v2014
        %v2016 = vpop.f32.mrf.mxu0
        %v2017 = vadd.f32 %v609, %v2016
        %v2018 = vpop.f32.mrf.mxu0
        %v2019 = vpop.f32.mrf.mxu0
        %2020 = vdwg.mxu0
        %2021 = vmatprep.subr.bf16.mxu0 %v1551
        %2022 = vmatpush1.bf16.msra.mxu0 %v1550
        %2023 = vmatprep.subr.bf16.mxu0 %v1547
        %2024 = vmatpush1.bf16.msra.mxu0 %v1546
        %2025 = vmatprep.subr.bf16.mxu0 %v1543
        %2026 = vmatpush1.bf16.msra.mxu0 %v1542
        %2027 = vmatprep.subr.bf16.mxu0 %v1539
        %2028 = vmatpush1.bf16.msra.mxu0 %v1538
        %2029 = vmatprep.subr.bf16.mxu0 %v1535
        %2030 = vmatpush1.bf16.msra.mxu0 %v1534
        %2031 = vmatprep.subr.bf16.mxu0 %v1531
        %2032 = vmatpush1.bf16.msra.mxu0 %v1530
        %2033 = vmatprep.subr.bf16.mxu0 %v1527
        %2034 = vmatpush1.bf16.msra.mxu0 %v1526
        %2035 = vmatprep.subr.bf16.mxu0 %v1523
        %2036 = vmatpush1.bf16.msra.mxu0 %v1522
        %2037 = vmatprep.subr.bf16.mxu0 %v1583
        %2038 = vmatpush2.bf16.msra.mxu0 %v1582
        %2039 = vmatprep.subr.bf16.mxu0 %v1579
        %2040 = vmatpush2.bf16.msra.mxu0 %v1578
        %2041 = vmatprep.subr.bf16.mxu0 %v1575
        %2042 = vmatpush2.bf16.msra.mxu0 %v1574
        %2043 = vmatprep.subr.bf16.mxu0 %v1571
        %2044 = vmatpush2.bf16.msra.mxu0 %v1570
        %2045 = vmatprep.subr.bf16.mxu0 %v1567
        %2046 = vmatpush2.bf16.msra.mxu0 %v1566
        %2047 = vmatprep.subr.bf16.mxu0 %v1563
        %2048 = vmatpush2.bf16.msra.mxu0 %v1562
        %2049 = vmatprep.subr.bf16.mxu0 %v1559
        %2050 = vmatpush2.bf16.msra.mxu0 %v1558
        %2051 = vmatprep.subr.bf16.mxu0 %v1555
        %2052 = vmatpush2.bf16.msra.mxu0 %v1554
        %2053 = vmatprep.mubr.bf16.mxu0 %v661
        %2054 = vmatmul.mubr.bf16.gmra.mxu0 %v660
        %v2055 = vpop.f32.mrf.mxu0
        %v2056 = vadd.f32 %v2005, %v2055
        %v2057 = vpop.f32.mrf.mxu0
        %v2058 = vadd.f32 %v2007, %v2057
        %v2059 = vpop.f32.mrf.mxu0
        %v2060 = vadd.f32 %v2009, %v2059
        %v2061 = vpop.f32.mrf.mxu0
        %v2062 = vadd.f32 %v2011, %v2061
        %2063 = vmatprep.mubr.bf16.mxu0 %v669
        %2064 = vmatmul.mubr.bf16.gmra.mxu0 %v668
        %v2065 = vpop.f32.mrf.mxu0
        %v2066 = vadd.f32 %v2015, %v2065
        %v2067 = vpop.f32.mrf.mxu0
        %v2068 = vadd.f32 %v2017, %v2067
        %v2069 = vpop.f32.mrf.mxu0
        %v2070 = vpop.f32.mrf.mxu0
        %2071 = vdwg.mxu0
        %2072 = vmatprep.subr.bf16.mxu0 %v1615
        %2073 = vmatpush1.bf16.msra.mxu0 %v1614
        %2074 = vmatprep.subr.bf16.mxu0 %v1611
        %2075 = vmatpush1.bf16.msra.mxu0 %v1610
        %2076 = vmatprep.subr.bf16.mxu0 %v1607
        %2077 = vmatpush1.bf16.msra.mxu0 %v1606
        %2078 = vmatprep.subr.bf16.mxu0 %v1603
        %2079 = vmatpush1.bf16.msra.mxu0 %v1602
        %2080 = vmatprep.subr.bf16.mxu0 %v1599
        %2081 = vmatpush1.bf16.msra.mxu0 %v1598
        %2082 = vmatprep.subr.bf16.mxu0 %v1595
        %2083 = vmatpush1.bf16.msra.mxu0 %v1594
        %2084 = vmatprep.subr.bf16.mxu0 %v1591
        %2085 = vmatpush1.bf16.msra.mxu0 %v1590
        %2086 = vmatprep.subr.bf16.mxu0 %v1587
        %2087 = vmatpush1.bf16.msra.mxu0 %v1586
        %2088 = vmatprep.subr.bf16.mxu0 %v1647
        %2089 = vmatpush2.bf16.msra.mxu0 %v1646
        %2090 = vmatprep.subr.bf16.mxu0 %v1643
        %2091 = vmatpush2.bf16.msra.mxu0 %v1642
        %2092 = vmatprep.subr.bf16.mxu0 %v1639
        %2093 = vmatpush2.bf16.msra.mxu0 %v1638
        %2094 = vmatprep.subr.bf16.mxu0 %v1635
        %2095 = vmatpush2.bf16.msra.mxu0 %v1634
        %2096 = vmatprep.subr.bf16.mxu0 %v1631
        %2097 = vmatpush2.bf16.msra.mxu0 %v1630
        %2098 = vmatprep.subr.bf16.mxu0 %v1627
        %2099 = vmatpush2.bf16.msra.mxu0 %v1626
        %2100 = vmatprep.subr.bf16.mxu0 %v1623
        %2101 = vmatpush2.bf16.msra.mxu0 %v1622
        %2102 = vmatprep.subr.bf16.mxu0 %v1619
        %2103 = vmatpush2.bf16.msra.mxu0 %v1618
        %2104 = vmatprep.mubr.bf16.mxu0 %v663
        %2105 = vmatmul.mubr.bf16.gmra.mxu0 %v662
        %v2106 = vpop.f32.mrf.mxu0
        %v2107 = vadd.f32 %v2056, %v2106
        %v2108 = vpop.f32.mrf.mxu0
        %v2109 = vadd.f32 %v2058, %v2108
        %v2110 = vpop.f32.mrf.mxu0
        %v2111 = vadd.f32 %v2060, %v2110
        %v2112 = vpop.f32.mrf.mxu0
        %v2113 = vadd.f32 %v2062, %v2112
        %2114 = vmatprep.mubr.bf16.mxu0 %v671
        %2115 = vmatmul.mubr.bf16.gmra.mxu0 %v670
        %v2116 = vpop.f32.mrf.mxu0
        %v2117 = vadd.f32 %v2066, %v2116
        %v2118 = vpop.f32.mrf.mxu0
        %v2119 = vadd.f32 %v2068, %v2118
        %v2120 = vpop.f32.mrf.mxu0
        %v2121 = vpop.f32.mrf.mxu0
        %2122 = vdwg.mxu0
        %2123 = vmatprep.subr.bf16.mxu0 %v1679
        %2124 = vmatpush1.bf16.msra.mxu0 %v1678
        %2125 = vmatprep.subr.bf16.mxu0 %v1675
        %2126 = vmatpush1.bf16.msra.mxu0 %v1674
        %2127 = vmatprep.subr.bf16.mxu0 %v1671
        %2128 = vmatpush1.bf16.msra.mxu0 %v1670
        %2129 = vmatprep.subr.bf16.mxu0 %v1667
        %2130 = vmatpush1.bf16.msra.mxu0 %v1666
        %2131 = vmatprep.subr.bf16.mxu0 %v1663
        %2132 = vmatpush1.bf16.msra.mxu0 %v1662
        %2133 = vmatprep.subr.bf16.mxu0 %v1659
        %2134 = vmatpush1.bf16.msra.mxu0 %v1658
        %2135 = vmatprep.subr.bf16.mxu0 %v1655
        %2136 = vmatpush1.bf16.msra.mxu0 %v1654
        %2137 = vmatprep.subr.bf16.mxu0 %v1651
        %2138 = vmatpush1.bf16.msra.mxu0 %v1650
        %2139 = vmatprep.subr.bf16.mxu0 %v1711
        %2140 = vmatpush2.bf16.msra.mxu0 %v1710
        %2141 = vmatprep.subr.bf16.mxu0 %v1707
        %2142 = vmatpush2.bf16.msra.mxu0 %v1706
        %2143 = vmatprep.subr.bf16.mxu0 %v1703
        %2144 = vmatpush2.bf16.msra.mxu0 %v1702
        %2145 = vmatprep.subr.bf16.mxu0 %v1699
        %2146 = vmatpush2.bf16.msra.mxu0 %v1698
        %2147 = vmatprep.subr.bf16.mxu0 %v1695
        %2148 = vmatpush2.bf16.msra.mxu0 %v1694
        %2149 = vmatprep.subr.bf16.mxu0 %v1691
        %2150 = vmatpush2.bf16.msra.mxu0 %v1690
        %2151 = vmatprep.subr.bf16.mxu0 %v1687
        %2152 = vmatpush2.bf16.msra.mxu0 %v1686
        %2153 = vmatprep.subr.bf16.mxu0 %v1683
        %2154 = vmatpush2.bf16.msra.mxu0 %v1682
        %2155 = vmatprep.mubr.bf16.mxu0 %v665
        %2156 = vmatmul.mubr.bf16.gmra.mxu0 %v664
        %v2157 = vpop.f32.mrf.mxu0
        %v2158 = vadd.f32 %v2107, %v2157
        %v2159 = vpop.f32.mrf.mxu0
        %v2160 = vadd.f32 %v2109, %v2159
        %v2161 = vpop.f32.mrf.mxu0
        %v2162 = vadd.f32 %v2111, %v2161
        %v2163 = vpop.f32.mrf.mxu0
        %v2164 = vadd.f32 %v2113, %v2163
        %2165 = vmatprep.mubr.bf16.mxu0 %v673
        %2166 = vmatmul.mubr.bf16.gmra.mxu0 %v672
        %v2167 = vpop.f32.mrf.mxu0
        %v2168 = vadd.f32 %v2117, %v2167
        %v2169 = vpop.f32.mrf.mxu0
        %v2170 = vadd.f32 %v2119, %v2169
        %v2171 = vpop.f32.mrf.mxu0
        %v2172 = vpop.f32.mrf.mxu0
        %2173 = vdwg.mxu0
        %2174 = vmatprep.subr.bf16.mxu0 %v1489
        %2175 = vmatpush1.bf16.msra.mxu0 %v1488
        %2176 = vmatprep.subr.bf16.mxu0 %v1485
        %2177 = vmatpush1.bf16.msra.mxu0 %v1484
        %2178 = vmatprep.subr.bf16.mxu0 %v1481
        %2179 = vmatpush1.bf16.msra.mxu0 %v1480
        %2180 = vmatprep.subr.bf16.mxu0 %v1477
        %2181 = vmatpush1.bf16.msra.mxu0 %v1476
        %2182 = vmatprep.subr.bf16.mxu0 %v1473
        %2183 = vmatpush1.bf16.msra.mxu0 %v1472
        %2184 = vmatprep.subr.bf16.mxu0 %v1469
        %2185 = vmatpush1.bf16.msra.mxu0 %v1468
        %2186 = vmatprep.subr.bf16.mxu0 %v1465
        %2187 = vmatpush1.bf16.msra.mxu0 %v1464
        %2188 = vmatprep.subr.bf16.mxu0 %v1461
        %2189 = vmatpush1.bf16.msra.mxu0 %v1460
        %2190 = vmatprep.subr.bf16.mxu0 %v1521
        %2191 = vmatpush2.bf16.msra.mxu0 %v1520
        %2192 = vmatprep.subr.bf16.mxu0 %v1517
        %2193 = vmatpush2.bf16.msra.mxu0 %v1516
        %2194 = vmatprep.subr.bf16.mxu0 %v1513
        %2195 = vmatpush2.bf16.msra.mxu0 %v1512
        %2196 = vmatprep.subr.bf16.mxu0 %v1509
        %2197 = vmatpush2.bf16.msra.mxu0 %v1508
        %2198 = vmatprep.subr.bf16.mxu0 %v1505
        %2199 = vmatpush2.bf16.msra.mxu0 %v1504
        %2200 = vmatprep.subr.bf16.mxu0 %v1501
        %2201 = vmatpush2.bf16.msra.mxu0 %v1500
        %2202 = vmatprep.subr.bf16.mxu0 %v1497
        %2203 = vmatpush2.bf16.msra.mxu0 %v1496
        %2204 = vmatprep.subr.bf16.mxu0 %v1493
        %2205 = vmatpush2.bf16.msra.mxu0 %v1492
        %2206 = vmatprep.mubr.bf16.mxu0 %v659
        %2207 = vmatmul.mubr.bf16.gmra.mxu0 %v658
        %v2208 = vpop.f32.mrf.mxu0
        %v2209 = vadd.f32 %v613, %v2208
        %v2210 = vpop.f32.mrf.mxu0
        %v2211 = vadd.f32 %v617, %v2210
        %v2212 = vpop.f32.mrf.mxu0
        %v2213 = vadd.f32 %v613, %v2212
        %v2214 = vpop.f32.mrf.mxu0
        %v2215 = vadd.f32 %v617, %v2214
        %2216 = vmatprep.mubr.bf16.mxu0 %v667
        %2217 = vmatmul.mubr.bf16.gmra.mxu0 %v666
        %v2218 = vpop.f32.mrf.mxu0
        %v2219 = vadd.f32 %v613, %v2218
        %v2220 = vpop.f32.mrf.mxu0
        %v2221 = vadd.f32 %v617, %v2220
        %v2222 = vpop.f32.mrf.mxu0
        %v2223 = vpop.f32.mrf.mxu0
        %2224 = vdwg.mxu0
        %2225 = vmatprep.subr.bf16.mxu0 %v1553
        %2226 = vmatpush1.bf16.msra.mxu0 %v1552
        %2227 = vmatprep.subr.bf16.mxu0 %v1549
        %2228 = vmatpush1.bf16.msra.mxu0 %v1548
        %2229 = vmatprep.subr.bf16.mxu0 %v1545
        %2230 = vmatpush1.bf16.msra.mxu0 %v1544
        %2231 = vmatprep.subr.bf16.mxu0 %v1541
        %2232 = vmatpush1.bf16.msra.mxu0 %v1540
        %2233 = vmatprep.subr.bf16.mxu0 %v1537
        %2234 = vmatpush1.bf16.msra.mxu0 %v1536
        %2235 = vmatprep.subr.bf16.mxu0 %v1533
        %2236 = vmatpush1.bf16.msra.mxu0 %v1532
        %2237 = vmatprep.subr.bf16.mxu0 %v1529
        %2238 = vmatpush1.bf16.msra.mxu0 %v1528
        %2239 = vmatprep.subr.bf16.mxu0 %v1525
        %2240 = vmatpush1.bf16.msra.mxu0 %v1524
        %2241 = vmatprep.subr.bf16.mxu0 %v1585
        %2242 = vmatpush2.bf16.msra.mxu0 %v1584
        %2243 = vmatprep.subr.bf16.mxu0 %v1581
        %2244 = vmatpush2.bf16.msra.mxu0 %v1580
        %2245 = vmatprep.subr.bf16.mxu0 %v1577
        %2246 = vmatpush2.bf16.msra.mxu0 %v1576
        %2247 = vmatprep.subr.bf16.mxu0 %v1573
        %2248 = vmatpush2.bf16.msra.mxu0 %v1572
        %2249 = vmatprep.subr.bf16.mxu0 %v1569
        %2250 = vmatpush2.bf16.msra.mxu0 %v1568
        %2251 = vmatprep.subr.bf16.mxu0 %v1565
        %2252 = vmatpush2.bf16.msra.mxu0 %v1564
        %2253 = vmatprep.subr.bf16.mxu0 %v1561
        %2254 = vmatpush2.bf16.msra.mxu0 %v1560
        %2255 = vmatprep.subr.bf16.mxu0 %v1557
        %2256 = vmatpush2.bf16.msra.mxu0 %v1556
        %2257 = vmatprep.mubr.bf16.mxu0 %v661
        %2258 = vmatmul.mubr.bf16.gmra.mxu0 %v660
        %v2259 = vpop.f32.mrf.mxu0
        %v2260 = vadd.f32 %v2209, %v2259
        %v2261 = vpop.f32.mrf.mxu0
        %v2262 = vadd.f32 %v2211, %v2261
        %v2263 = vpop.f32.mrf.mxu0
        %v2264 = vadd.f32 %v2213, %v2263
        %v2265 = vpop.f32.mrf.mxu0
        %v2266 = vadd.f32 %v2215, %v2265
        %2267 = vmatprep.mubr.bf16.mxu0 %v669
        %2268 = vmatmul.mubr.bf16.gmra.mxu0 %v668
        %v2269 = vpop.f32.mrf.mxu0
        %v2270 = vadd.f32 %v2219, %v2269
        %v2271 = vpop.f32.mrf.mxu0
        %v2272 = vadd.f32 %v2221, %v2271
        %v2273 = vpop.f32.mrf.mxu0
        %v2274 = vpop.f32.mrf.mxu0
        %2275 = vdwg.mxu0
        %2276 = vmatprep.subr.bf16.mxu0 %v1617
        %2277 = vmatpush1.bf16.msra.mxu0 %v1616
        %2278 = vmatprep.subr.bf16.mxu0 %v1613
        %2279 = vmatpush1.bf16.msra.mxu0 %v1612
        %2280 = vmatprep.subr.bf16.mxu0 %v1609
        %2281 = vmatpush1.bf16.msra.mxu0 %v1608
        %2282 = vmatprep.subr.bf16.mxu0 %v1605
        %2283 = vmatpush1.bf16.msra.mxu0 %v1604
        %2284 = vmatprep.subr.bf16.mxu0 %v1601
        %2285 = vmatpush1.bf16.msra.mxu0 %v1600
        %2286 = vmatprep.subr.bf16.mxu0 %v1597
        %2287 = vmatpush1.bf16.msra.mxu0 %v1596
        %2288 = vmatprep.subr.bf16.mxu0 %v1593
        %2289 = vmatpush1.bf16.msra.mxu0 %v1592
        %2290 = vmatprep.subr.bf16.mxu0 %v1589
        %2291 = vmatpush1.bf16.msra.mxu0 %v1588
        %2292 = vmatprep.subr.bf16.mxu0 %v1649
        %2293 = vmatpush2.bf16.msra.mxu0 %v1648
        %2294 = vmatprep.subr.bf16.mxu0 %v1645
        %2295 = vmatpush2.bf16.msra.mxu0 %v1644
        %2296 = vmatprep.subr.bf16.mxu0 %v1641
        %2297 = vmatpush2.bf16.msra.mxu0 %v1640
        %2298 = vmatprep.subr.bf16.mxu0 %v1637
        %2299 = vmatpush2.bf16.msra.mxu0 %v1636
        %2300 = vmatprep.subr.bf16.mxu0 %v1633
        %2301 = vmatpush2.bf16.msra.mxu0 %v1632
        %2302 = vmatprep.subr.bf16.mxu0 %v1629
        %2303 = vmatpush2.bf16.msra.mxu0 %v1628
        %2304 = vmatprep.subr.bf16.mxu0 %v1625
        %2305 = vmatpush2.bf16.msra.mxu0 %v1624
        %2306 = vmatprep.subr.bf16.mxu0 %v1621
        %2307 = vmatpush2.bf16.msra.mxu0 %v1620
        %2308 = vmatprep.mubr.bf16.mxu0 %v663
        %2309 = vmatmul.mubr.bf16.gmra.mxu0 %v662
        %v2310 = vpop.f32.mrf.mxu0
        %v2311 = vadd.f32 %v2260, %v2310
        %v2312 = vpop.f32.mrf.mxu0
        %v2313 = vadd.f32 %v2262, %v2312
        %v2314 = vpop.f32.mrf.mxu0
        %v2315 = vadd.f32 %v2264, %v2314
        %v2316 = vpop.f32.mrf.mxu0
        %v2317 = vadd.f32 %v2266, %v2316
        %2318 = vmatprep.mubr.bf16.mxu0 %v671
        %2319 = vmatmul.mubr.bf16.gmra.mxu0 %v670
        %v2320 = vpop.f32.mrf.mxu0
        %v2321 = vadd.f32 %v2270, %v2320
        %v2322 = vpop.f32.mrf.mxu0
        %v2323 = vadd.f32 %v2272, %v2322
        %v2324 = vpop.f32.mrf.mxu0
        %v2325 = vpop.f32.mrf.mxu0
        %2326 = vdwg.mxu0
        %2327 = vmatprep.subr.bf16.mxu0 %v1681
        %2328 = vmatpush1.bf16.msra.mxu0 %v1680
        %2329 = vmatprep.subr.bf16.mxu0 %v1677
        %2330 = vmatpush1.bf16.msra.mxu0 %v1676
        %2331 = vmatprep.subr.bf16.mxu0 %v1673
        %2332 = vmatpush1.bf16.msra.mxu0 %v1672
        %2333 = vmatprep.subr.bf16.mxu0 %v1669
        %2334 = vmatpush1.bf16.msra.mxu0 %v1668
        %2335 = vmatprep.subr.bf16.mxu0 %v1665
        %2336 = vmatpush1.bf16.msra.mxu0 %v1664
        %2337 = vmatprep.subr.bf16.mxu0 %v1661
        %2338 = vmatpush1.bf16.msra.mxu0 %v1660
        %2339 = vmatprep.subr.bf16.mxu0 %v1657
        %2340 = vmatpush1.bf16.msra.mxu0 %v1656
        %2341 = vmatprep.subr.bf16.mxu0 %v1653
        %2342 = vmatpush1.bf16.msra.mxu0 %v1652
        %2343 = vmatprep.subr.bf16.mxu0 %v1713
        %2344 = vmatpush2.bf16.msra.mxu0 %v1712
        %2345 = vmatprep.subr.bf16.mxu0 %v1709
        %2346 = vmatpush2.bf16.msra.mxu0 %v1708
        %2347 = vmatprep.subr.bf16.mxu0 %v1705
        %2348 = vmatpush2.bf16.msra.mxu0 %v1704
        %2349 = vmatprep.subr.bf16.mxu0 %v1701
        %2350 = vmatpush2.bf16.msra.mxu0 %v1700
        %2351 = vmatprep.subr.bf16.mxu0 %v1697
        %2352 = vmatpush2.bf16.msra.mxu0 %v1696
        %2353 = vmatprep.subr.bf16.mxu0 %v1693
        %2354 = vmatpush2.bf16.msra.mxu0 %v1692
        %2355 = vmatprep.subr.bf16.mxu0 %v1689
        %2356 = vmatpush2.bf16.msra.mxu0 %v1688
        %2357 = vmatprep.subr.bf16.mxu0 %v1685
        %2358 = vmatpush2.bf16.msra.mxu0 %v1684
        %2359 = vmatprep.mubr.bf16.mxu0 %v665
        %2360 = vmatmul.mubr.bf16.gmra.mxu0 %v664
        %v2361 = vpop.f32.mrf.mxu0
        %v2362 = vadd.f32 %v2311, %v2361
        %v2363 = vpop.f32.mrf.mxu0
        %v2364 = vadd.f32 %v2313, %v2363
        %v2365 = vpop.f32.mrf.mxu0
        %v2366 = vadd.f32 %v2315, %v2365
        %v2367 = vpop.f32.mrf.mxu0
        %v2368 = vadd.f32 %v2317, %v2367
        %2369 = vmatprep.mubr.bf16.mxu0 %v673
        %2370 = vmatmul.mubr.bf16.gmra.mxu0 %v672
        %v2371 = vpop.f32.mrf.mxu0
        %v2372 = vadd.f32 %v2321, %v2371
        %v2373 = vpop.f32.mrf.mxu0
        %v2374 = vadd.f32 %v2323, %v2373
        %v2375 = vpop.f32.mrf.mxu0
        %v2376 = vpop.f32.mrf.mxu0
        %2377 = vdwg.mxu0
        %v2378 = vmax.f32 %v2158, 0.0
        %v2379 = vmax.f32 %v2160, 0.0
        %v2380 = vmax.f32 %v2362, 0.0
        %v2381 = vmax.f32 %v2364, 0.0
        %v2382 = vmax.f32 %v2162, 0.0
        %v2383 = vmax.f32 %v2164, 0.0
        %v2384 = vmax.f32 %v2366, 0.0
        %v2385 = vmax.f32 %v2368, 0.0
        %v2386 = vmax.f32 %v2168, 0.0
        %v2387 = vmax.f32 %v2170, 0.0
        %v2388 = vmax.f32 %v2372, 0.0
        %v2389 = vmax.f32 %v2374, 0.0
        %v2390 = vpack.c.bf16 %v2382, %v2378
        %v2391 = vpack.c.bf16 %v2383, %v2379
        %v2392 = vpack.c.bf16 %v2384, %v2380
        %v2393 = vpack.c.bf16 %v2385, %v2381
        %v2394 = vpack.c.bf16 %v2386, %v2386
        %v2395 = vpack.c.bf16 %v2387, %v2387
        %v2396 = vpack.c.bf16 %v2388, %v2388
        %v2397 = vpack.c.bf16 %v2389, %v2389
        %v2398 = vld [vmem:[#allocation6] sm:$0xff]
        %v2399 = vld [vmem:[#allocation6 + $0x8] sm:$0xff]
        %v2400 = vld [vmem:[#allocation6 + $0x10] sm:$0xff]
        %v2401 = vld [vmem:[#allocation6 + $0x18] sm:$0xff]
        %v2402 = vld [vmem:[#allocation6 + $0x20] sm:$0xff]
        %v2403 = vld [vmem:[#allocation6 + $0x28] sm:$0xff]
        %v2404 = vld [vmem:[#allocation6 + $0x30] sm:$0xff]
        %v2405 = vld [vmem:[#allocation6 + $0x38] sm:$0xff]
        %v2406 = vld [vmem:[#allocation6 + $0x40] sm:$0xff]
        %v2407 = vld [vmem:[#allocation6 + $0x48] sm:$0xff]
        %v2408 = vld [vmem:[#allocation6 + $0x50] sm:$0xff]
        %v2409 = vld [vmem:[#allocation6 + $0x58] sm:$0xff]
        %v2410 = vld [vmem:[#allocation6 + $0x60] sm:$0xff]
        %v2411 = vld [vmem:[#allocation6 + $0x68] sm:$0xff]
        %v2412 = vld [vmem:[#allocation6 + $0x70] sm:$0xff]
        %v2413 = vld [vmem:[#allocation6 + $0x78] sm:$0xff]
        %v2414 = vld [vmem:[#allocation6 + $0x80] sm:$0xff]
        %v2415 = vld [vmem:[#allocation6 + $0x88] sm:$0xff]
        %v2416 = vld [vmem:[#allocation6 + $0x90] sm:$0xff]
        %v2417 = vld [vmem:[#allocation6 + $0x98] sm:$0xff]
        %v2418 = vld [vmem:[#allocation6 + $0xa0] sm:$0xff]
        %v2419 = vld [vmem:[#allocation6 + $0xa8] sm:$0xff]
        %v2420 = vld [vmem:[#allocation6 + $0xb0] sm:$0xff]
        %v2421 = vld [vmem:[#allocation6 + $0xb8] sm:$0xff]
        %v2422 = vld [vmem:[#allocation6 + $0xc0] sm:$0xff]
        %v2423 = vld [vmem:[#allocation6 + $0xc8] sm:$0xff]
        %v2424 = vld [vmem:[#allocation6 + $0xd0] sm:$0xff]
        %v2425 = vld [vmem:[#allocation6 + $0xd8] sm:$0xff]
        %v2426 = vld [vmem:[#allocation6 + $0xe0] sm:$0xff]
        %v2427 = vld [vmem:[#allocation6 + $0xe8] sm:$0xff]
        %v2428 = vld [vmem:[#allocation6 + $0xf0] sm:$0xff]
        %v2429 = vld [vmem:[#allocation6 + $0xf8] sm:$0xff]
        %v2430 = vld [vmem:[#allocation6 + $0x100] sm:$0xff]
        %v2431 = vld [vmem:[#allocation6 + $0x108] sm:$0xff]
        %v2432 = vld [vmem:[#allocation6 + $0x110] sm:$0xff]
        %v2433 = vld [vmem:[#allocation6 + $0x118] sm:$0xff]
        %v2434 = vld [vmem:[#allocation6 + $0x120] sm:$0xff]
        %v2435 = vld [vmem:[#allocation6 + $0x128] sm:$0xff]
        %v2436 = vld [vmem:[#allocation6 + $0x130] sm:$0xff]
        %v2437 = vld [vmem:[#allocation6 + $0x138] sm:$0xff]
        %v2438 = vld [vmem:[#allocation6 + $0x140] sm:$0xff]
        %v2439 = vld [vmem:[#allocation6 + $0x148] sm:$0xff]
        %v2440 = vld [vmem:[#allocation6 + $0x150] sm:$0xff]
        %v2441 = vld [vmem:[#allocation6 + $0x158] sm:$0xff]
        %v2442 = vld [vmem:[#allocation6 + $0x160] sm:$0xff]
        %v2443 = vld [vmem:[#allocation6 + $0x168] sm:$0xff]
        %v2444 = vld [vmem:[#allocation6 + $0x170] sm:$0xff]
        %v2445 = vld [vmem:[#allocation6 + $0x178] sm:$0xff]
        %v2446 = vld [vmem:[#allocation6 + $0x180] sm:$0xff]
        %v2447 = vld [vmem:[#allocation6 + $0x188] sm:$0xff]
        %v2448 = vld [vmem:[#allocation6 + $0x190] sm:$0xff]
        %v2449 = vld [vmem:[#allocation6 + $0x198] sm:$0xff]
        %v2450 = vld [vmem:[#allocation6 + $0x1a0] sm:$0xff]
        %v2451 = vld [vmem:[#allocation6 + $0x1a8] sm:$0xff]
        %v2452 = vld [vmem:[#allocation6 + $0x1b0] sm:$0xff]
        %v2453 = vld [vmem:[#allocation6 + $0x1b8] sm:$0xff]
        %v2454 = vld [vmem:[#allocation6 + $0x1c0] sm:$0xff]
        %v2455 = vld [vmem:[#allocation6 + $0x1c8] sm:$0xff]
        %v2456 = vld [vmem:[#allocation6 + $0x1d0] sm:$0xff]
        %v2457 = vld [vmem:[#allocation6 + $0x1d8] sm:$0xff]
        %v2458 = vld [vmem:[#allocation6 + $0x1e0] sm:$0xff]
        %v2459 = vld [vmem:[#allocation6 + $0x1e8] sm:$0xff]
        %v2460 = vld [vmem:[#allocation6 + $0x1f0] sm:$0xff]
        %v2461 = vld [vmem:[#allocation6 + $0x1f8] sm:$0xff]
        %v2462 = vld [vmem:[%s4] sm:$0x3]
        %v2464 = vlaneseq
        %v2465 = vshrl.u32 %v2464, 7
        %v2466 = vsub.s32 0, %v2465
        %v2467 = vrot.slane %v2462, %v2466
        %v2468 = vlaneseq
        %v2469 = vshrl.u32 %v2468, 7
        %v2470 = vsub.s32 1, %v2469
        %v2471 = vrot.slane %v2462, %v2470
        %v2538 = vunpack.c.l.b16 %v2398
        %v2539 = vunpack.c.h.b16 %v2398
        %v2540 = vunpack.c.l.b16 %v2399
        %v2541 = vunpack.c.h.b16 %v2399
        %v2542 = vunpack.c.l.b16 %v2400
        %v2543 = vunpack.c.h.b16 %v2400
        %v2544 = vunpack.c.l.b16 %v2401
        %v2545 = vunpack.c.h.b16 %v2401
        %v2546 = vunpack.c.l.b16 %v2402
        %v2547 = vunpack.c.h.b16 %v2402
        %v2548 = vunpack.c.l.b16 %v2403
        %v2549 = vunpack.c.h.b16 %v2403
        %v2550 = vunpack.c.l.b16 %v2404
        %v2551 = vunpack.c.h.b16 %v2404
        %v2552 = vunpack.c.l.b16 %v2405
        %v2553 = vunpack.c.h.b16 %v2405
        %v2554 = vunpack.c.l.b16 %v2406
        %v2555 = vunpack.c.h.b16 %v2406
        %v2556 = vunpack.c.l.b16 %v2407
        %v2557 = vunpack.c.h.b16 %v2407
        %v2558 = vunpack.c.l.b16 %v2408
        %v2559 = vunpack.c.h.b16 %v2408
        %v2560 = vunpack.c.l.b16 %v2409
        %v2561 = vunpack.c.h.b16 %v2409
        %v2562 = vunpack.c.l.b16 %v2410
        %v2563 = vunpack.c.h.b16 %v2410
        %v2564 = vunpack.c.l.b16 %v2411
        %v2565 = vunpack.c.h.b16 %v2411
        %v2566 = vunpack.c.l.b16 %v2412
        %v2567 = vunpack.c.h.b16 %v2412
        %v2568 = vunpack.c.l.b16 %v2413
        %v2569 = vunpack.c.h.b16 %v2413
        %v2570 = vunpack.c.l.b16 %v2414
        %v2571 = vunpack.c.h.b16 %v2414
        %v2572 = vunpack.c.l.b16 %v2415
        %v2573 = vunpack.c.h.b16 %v2415
        %v2574 = vunpack.c.l.b16 %v2416
        %v2575 = vunpack.c.h.b16 %v2416
        %v2576 = vunpack.c.l.b16 %v2417
        %v2577 = vunpack.c.h.b16 %v2417
        %v2578 = vunpack.c.l.b16 %v2418
        %v2579 = vunpack.c.h.b16 %v2418
        %v2580 = vunpack.c.l.b16 %v2419
        %v2581 = vunpack.c.h.b16 %v2419
        %v2582 = vunpack.c.l.b16 %v2420
        %v2583 = vunpack.c.h.b16 %v2420
        %v2584 = vunpack.c.l.b16 %v2421
        %v2585 = vunpack.c.h.b16 %v2421
        %v2586 = vunpack.c.l.b16 %v2422
        %v2587 = vunpack.c.h.b16 %v2422
        %v2588 = vunpack.c.l.b16 %v2423
        %v2589 = vunpack.c.h.b16 %v2423
        %v2590 = vunpack.c.l.b16 %v2424
        %v2591 = vunpack.c.h.b16 %v2424
        %v2592 = vunpack.c.l.b16 %v2425
        %v2593 = vunpack.c.h.b16 %v2425
        %v2594 = vunpack.c.l.b16 %v2426
        %v2595 = vunpack.c.h.b16 %v2426
        %v2596 = vunpack.c.l.b16 %v2427
        %v2597 = vunpack.c.h.b16 %v2427
        %v2598 = vunpack.c.l.b16 %v2428
        %v2599 = vunpack.c.h.b16 %v2428
        %v2600 = vunpack.c.l.b16 %v2429
        %v2601 = vunpack.c.h.b16 %v2429
        %v2602 = vunpack.c.l.b16 %v2430
        %v2603 = vunpack.c.h.b16 %v2430
        %v2604 = vunpack.c.l.b16 %v2431
        %v2605 = vunpack.c.h.b16 %v2431
        %v2606 = vunpack.c.l.b16 %v2432
        %v2607 = vunpack.c.h.b16 %v2432
        %v2608 = vunpack.c.l.b16 %v2433
        %v2609 = vunpack.c.h.b16 %v2433
        %v2610 = vunpack.c.l.b16 %v2434
        %v2611 = vunpack.c.h.b16 %v2434
        %v2612 = vunpack.c.l.b16 %v2435
        %v2613 = vunpack.c.h.b16 %v2435
        %v2614 = vunpack.c.l.b16 %v2436
        %v2615 = vunpack.c.h.b16 %v2436
        %v2616 = vunpack.c.l.b16 %v2437
        %v2617 = vunpack.c.h.b16 %v2437
        %v2618 = vunpack.c.l.b16 %v2438
        %v2619 = vunpack.c.h.b16 %v2438
        %v2620 = vunpack.c.l.b16 %v2439
        %v2621 = vunpack.c.h.b16 %v2439
        %v2622 = vunpack.c.l.b16 %v2440
        %v2623 = vunpack.c.h.b16 %v2440
        %v2624 = vunpack.c.l.b16 %v2441
        %v2625 = vunpack.c.h.b16 %v2441
        %v2626 = vunpack.c.l.b16 %v2442
        %v2627 = vunpack.c.h.b16 %v2442
        %v2628 = vunpack.c.l.b16 %v2443
        %v2629 = vunpack.c.h.b16 %v2443
        %v2630 = vunpack.c.l.b16 %v2444
        %v2631 = vunpack.c.h.b16 %v2444
        %v2632 = vunpack.c.l.b16 %v2445
        %v2633 = vunpack.c.h.b16 %v2445
        %v2634 = vunpack.c.l.b16 %v2446
        %v2635 = vunpack.c.h.b16 %v2446
        %v2636 = vunpack.c.l.b16 %v2447
        %v2637 = vunpack.c.h.b16 %v2447
        %v2638 = vunpack.c.l.b16 %v2448
        %v2639 = vunpack.c.h.b16 %v2448
        %v2640 = vunpack.c.l.b16 %v2449
        %v2641 = vunpack.c.h.b16 %v2449
        %v2642 = vunpack.c.l.b16 %v2450
        %v2643 = vunpack.c.h.b16 %v2450
        %v2644 = vunpack.c.l.b16 %v2451
        %v2645 = vunpack.c.h.b16 %v2451
        %v2646 = vunpack.c.l.b16 %v2452
        %v2647 = vunpack.c.h.b16 %v2452
        %v2648 = vunpack.c.l.b16 %v2453
        %v2649 = vunpack.c.h.b16 %v2453
        %v2650 = vunpack.c.l.b16 %v2454
        %v2651 = vunpack.c.h.b16 %v2454
        %v2652 = vunpack.c.l.b16 %v2455
        %v2653 = vunpack.c.h.b16 %v2455
        %v2654 = vunpack.c.l.b16 %v2456
        %v2655 = vunpack.c.h.b16 %v2456
        %v2656 = vunpack.c.l.b16 %v2457
        %v2657 = vunpack.c.h.b16 %v2457
        %v2658 = vunpack.c.l.b16 %v2458
        %v2659 = vunpack.c.h.b16 %v2458
        %v2660 = vunpack.c.l.b16 %v2459
        %v2661 = vunpack.c.h.b16 %v2459
        %v2662 = vunpack.c.l.b16 %v2460
        %v2663 = vunpack.c.h.b16 %v2460
        %v2664 = vunpack.c.l.b16 %v2461
        %v2665 = vunpack.c.h.b16 %v2461
        %v2666 = vpack.c.b16 %v2540, %v2538
        %v2667 = vpack.c.b16 %v2541, %v2539
        %v2668 = vpack.c.b16 %v2544, %v2542
        %v2669 = vpack.c.b16 %v2545, %v2543
        %v2670 = vpack.c.b16 %v2548, %v2546
        %v2671 = vpack.c.b16 %v2549, %v2547
        %v2672 = vpack.c.b16 %v2552, %v2550
        %v2673 = vpack.c.b16 %v2553, %v2551
        %v2674 = vpack.c.b16 %v2556, %v2554
        %v2675 = vpack.c.b16 %v2557, %v2555
        %v2676 = vpack.c.b16 %v2560, %v2558
        %v2677 = vpack.c.b16 %v2561, %v2559
        %v2678 = vpack.c.b16 %v2564, %v2562
        %v2679 = vpack.c.b16 %v2565, %v2563
        %v2680 = vpack.c.b16 %v2568, %v2566
        %v2681 = vpack.c.b16 %v2569, %v2567
        %v2682 = vpack.c.b16 %v2572, %v2570
        %v2683 = vpack.c.b16 %v2573, %v2571
        %v2684 = vpack.c.b16 %v2576, %v2574
        %v2685 = vpack.c.b16 %v2577, %v2575
        %v2686 = vpack.c.b16 %v2580, %v2578
        %v2687 = vpack.c.b16 %v2581, %v2579
        %v2688 = vpack.c.b16 %v2584, %v2582
        %v2689 = vpack.c.b16 %v2585, %v2583
        %v2690 = vpack.c.b16 %v2588, %v2586
        %v2691 = vpack.c.b16 %v2589, %v2587
        %v2692 = vpack.c.b16 %v2592, %v2590
        %v2693 = vpack.c.b16 %v2593, %v2591
        %v2694 = vpack.c.b16 %v2596, %v2594
        %v2695 = vpack.c.b16 %v2597, %v2595
        %v2696 = vpack.c.b16 %v2600, %v2598
        %v2697 = vpack.c.b16 %v2601, %v2599
        %v2698 = vpack.c.b16 %v2604, %v2602
        %v2699 = vpack.c.b16 %v2605, %v2603
        %v2700 = vpack.c.b16 %v2608, %v2606
        %v2701 = vpack.c.b16 %v2609, %v2607
        %v2702 = vpack.c.b16 %v2612, %v2610
        %v2703 = vpack.c.b16 %v2613, %v2611
        %v2704 = vpack.c.b16 %v2616, %v2614
        %v2705 = vpack.c.b16 %v2617, %v2615
        %v2706 = vpack.c.b16 %v2620, %v2618
        %v2707 = vpack.c.b16 %v2621, %v2619
        %v2708 = vpack.c.b16 %v2624, %v2622
        %v2709 = vpack.c.b16 %v2625, %v2623
        %v2710 = vpack.c.b16 %v2628, %v2626
        %v2711 = vpack.c.b16 %v2629, %v2627
        %v2712 = vpack.c.b16 %v2632, %v2630
        %v2713 = vpack.c.b16 %v2633, %v2631
        %v2714 = vpack.c.b16 %v2636, %v2634
        %v2715 = vpack.c.b16 %v2637, %v2635
        %v2716 = vpack.c.b16 %v2640, %v2638
        %v2717 = vpack.c.b16 %v2641, %v2639
        %v2718 = vpack.c.b16 %v2644, %v2642
        %v2719 = vpack.c.b16 %v2645, %v2643
        %v2720 = vpack.c.b16 %v2648, %v2646
        %v2721 = vpack.c.b16 %v2649, %v2647
        %v2722 = vpack.c.b16 %v2652, %v2650
        %v2723 = vpack.c.b16 %v2653, %v2651
        %v2724 = vpack.c.b16 %v2656, %v2654
        %v2725 = vpack.c.b16 %v2657, %v2655
        %v2726 = vpack.c.b16 %v2660, %v2658
        %v2727 = vpack.c.b16 %v2661, %v2659
        %v2728 = vpack.c.b16 %v2664, %v2662
        %v2729 = vpack.c.b16 %v2665, %v2663
        %2794 = vmatprep.subr.bf16.mxu0 %v2681
        %2795 = vmatpush1.bf16.msra.mxu0 %v2680
        %2796 = vmatprep.subr.bf16.mxu0 %v2679
        %2797 = vmatpush1.bf16.msra.mxu0 %v2678
        %2798 = vmatprep.subr.bf16.mxu0 %v2677
        %2799 = vmatpush1.bf16.msra.mxu0 %v2676
        %2800 = vmatprep.subr.bf16.mxu0 %v2675
        %2801 = vmatpush1.bf16.msra.mxu0 %v2674
        %2802 = vmatprep.subr.bf16.mxu0 %v2673
        %2803 = vmatpush1.bf16.msra.mxu0 %v2672
        %2804 = vmatprep.subr.bf16.mxu0 %v2671
        %2805 = vmatpush1.bf16.msra.mxu0 %v2670
        %2806 = vmatprep.subr.bf16.mxu0 %v2669
        %2807 = vmatpush1.bf16.msra.mxu0 %v2668
        %2808 = vmatprep.subr.bf16.mxu0 %v2667
        %2809 = vmatpush1.bf16.msra.mxu0 %v2666
        %2810 = vmatprep.subr.bf16.mxu0 %v2697
        %2811 = vmatpush2.bf16.msra.mxu0 %v2696
        %2812 = vmatprep.subr.bf16.mxu0 %v2695
        %2813 = vmatpush2.bf16.msra.mxu0 %v2694
        %2814 = vmatprep.subr.bf16.mxu0 %v2693
        %2815 = vmatpush2.bf16.msra.mxu0 %v2692
        %2816 = vmatprep.subr.bf16.mxu0 %v2691
        %2817 = vmatpush2.bf16.msra.mxu0 %v2690
        %2818 = vmatprep.subr.bf16.mxu0 %v2689
        %2819 = vmatpush2.bf16.msra.mxu0 %v2688
        %2820 = vmatprep.subr.bf16.mxu0 %v2687
        %2821 = vmatpush2.bf16.msra.mxu0 %v2686
        %2822 = vmatprep.subr.bf16.mxu0 %v2685
        %2823 = vmatpush2.bf16.msra.mxu0 %v2684
        %2824 = vmatprep.subr.bf16.mxu0 %v2683
        %2825 = vmatpush2.bf16.msra.mxu0 %v2682
        %2826 = vmatprep.mubr.bf16.mxu0 %v2391
        %2827 = vmatmul.mubr.bf16.gmra.mxu0 %v2390
        %v2828 = vpop.f32.mrf.mxu0
        %v2829 = vadd.f32 %v2467, %v2828
        %v2830 = vpop.f32.mrf.mxu0
        %v2831 = vadd.f32 %v2471, %v2830
        %v2832 = vpop.f32.mrf.mxu0
        %v2833 = vadd.f32 %v2467, %v2832
        %v2834 = vpop.f32.mrf.mxu0
        %v2835 = vadd.f32 %v2471, %v2834
        %2836 = vmatprep.mubr.bf16.mxu0 %v2395
        %2837 = vmatmul.mubr.bf16.gmra.mxu0 %v2394
        %v2838 = vpop.f32.mrf.mxu0
        %v2839 = vadd.f32 %v2467, %v2838
        %v2840 = vpop.f32.mrf.mxu0
        %v2841 = vadd.f32 %v2471, %v2840
        %v2842 = vpop.f32.mrf.mxu0
        %v2843 = vpop.f32.mrf.mxu0
        %2844 = vdwg.mxu0
        %2845 = vmatprep.subr.bf16.mxu0 %v2713
        %2846 = vmatpush1.bf16.msra.mxu0 %v2712
        %2847 = vmatprep.subr.bf16.mxu0 %v2711
        %2848 = vmatpush1.bf16.msra.mxu0 %v2710
        %2849 = vmatprep.subr.bf16.mxu0 %v2709
        %2850 = vmatpush1.bf16.msra.mxu0 %v2708
        %2851 = vmatprep.subr.bf16.mxu0 %v2707
        %2852 = vmatpush1.bf16.msra.mxu0 %v2706
        %2853 = vmatprep.subr.bf16.mxu0 %v2705
        %2854 = vmatpush1.bf16.msra.mxu0 %v2704
        %2855 = vmatprep.subr.bf16.mxu0 %v2703
        %2856 = vmatpush1.bf16.msra.mxu0 %v2702
        %2857 = vmatprep.subr.bf16.mxu0 %v2701
        %2858 = vmatpush1.bf16.msra.mxu0 %v2700
        %2859 = vmatprep.subr.bf16.mxu0 %v2699
        %2860 = vmatpush1.bf16.msra.mxu0 %v2698
        %2861 = vmatprep.subr.bf16.mxu0 %v2729
        %2862 = vmatpush2.bf16.msra.mxu0 %v2728
        %2863 = vmatprep.subr.bf16.mxu0 %v2727
        %2864 = vmatpush2.bf16.msra.mxu0 %v2726
        %2865 = vmatprep.subr.bf16.mxu0 %v2725
        %2866 = vmatpush2.bf16.msra.mxu0 %v2724
        %2867 = vmatprep.subr.bf16.mxu0 %v2723
        %2868 = vmatpush2.bf16.msra.mxu0 %v2722
        %2869 = vmatprep.subr.bf16.mxu0 %v2721
        %2870 = vmatpush2.bf16.msra.mxu0 %v2720
        %2871 = vmatprep.subr.bf16.mxu0 %v2719
        %2872 = vmatpush2.bf16.msra.mxu0 %v2718
        %2873 = vmatprep.subr.bf16.mxu0 %v2717
        %2874 = vmatpush2.bf16.msra.mxu0 %v2716
        %2875 = vmatprep.subr.bf16.mxu0 %v2715
        %2876 = vmatpush2.bf16.msra.mxu0 %v2714
        %2877 = vmatprep.mubr.bf16.mxu0 %v2393
        %2878 = vmatmul.mubr.bf16.gmra.mxu0 %v2392
        %v2879 = vpop.f32.mrf.mxu0
        %v2880 = vadd.f32 %v2829, %v2879
        %v2881 = vpop.f32.mrf.mxu0
        %v2882 = vadd.f32 %v2831, %v2881
        %v2883 = vpop.f32.mrf.mxu0
        %v2884 = vadd.f32 %v2833, %v2883
        %v2885 = vpop.f32.mrf.mxu0
        %v2886 = vadd.f32 %v2835, %v2885
        %2887 = vmatprep.mubr.bf16.mxu0 %v2397
        %2888 = vmatmul.mubr.bf16.gmra.mxu0 %v2396
        %v2889 = vpop.f32.mrf.mxu0
        %v2890 = vadd.f32 %v2839, %v2889
        %v2891 = vpop.f32.mrf.mxu0
        %v2892 = vadd.f32 %v2841, %v2891
        %v2893 = vpop.f32.mrf.mxu0
        %v2894 = vpop.f32.mrf.mxu0
        %2895 = vdwg.mxu0
        %v2896 = vmax.f32 %v2880, 0.0
        %v2897 = vmax.f32 %v2882, 0.0
        %v2898 = vmax.f32 %v2884, 0.0
        %v2899 = vmax.f32 %v2886, 0.0
        %v2900 = vmax.f32 %v2890, 0.0
        %v2901 = vmax.f32 %v2892, 0.0
        %v2902 = vpack.c.bf16 %v2898, %v2896
        %v2903 = vpack.c.bf16 %v2899, %v2897
        %v2904 = vpack.c.bf16 %v2900, %v2900
        %v2905 = vpack.c.bf16 %v2901, %v2901
        %v2906 = vld [vmem:[%s5] sm:$0xf]
        %v2907 = vld [vmem:[%s5 + $0x4] sm:$0xf]
        %v2908 = vld [vmem:[%s5 + $0x8] sm:$0xf]
        %v2909 = vld [vmem:[%s5 + $0xc] sm:$0xf]
        %v2910 = vld [vmem:[%s5 + $0x10] sm:$0xf]
        %v2911 = vld [vmem:[%s5 + $0x14] sm:$0xf]
        %v2912 = vld [vmem:[%s5 + $0x18] sm:$0xf]
        %v2913 = vld [vmem:[%s5 + $0x1c] sm:$0xf]
        %v2914 = vld [vmem:[%s5 + $0x20] sm:$0xf]
        %v2915 = vld [vmem:[%s5 + $0x24] sm:$0xf]
        %v2916 = vld [vmem:[%s5 + $0x28] sm:$0xf]
        %v2917 = vld [vmem:[%s5 + $0x2c] sm:$0xf]
        %v2918 = vld [vmem:[%s5 + $0x30] sm:$0xf]
        %v2919 = vld [vmem:[%s5 + $0x34] sm:$0xf]
        %v2920 = vld [vmem:[%s5 + $0x38] sm:$0xf]
        %v2921 = vld [vmem:[%s5 + $0x3c] sm:$0xf]
        %v2922 = vld [vmem:[%s5 + $0x40] sm:$0xf]
        %v2923 = vld [vmem:[%s5 + $0x44] sm:$0xf]
        %v2924 = vld [vmem:[%s5 + $0x48] sm:$0xf]
        %v2925 = vld [vmem:[%s5 + $0x4c] sm:$0xf]
        %v2926 = vld [vmem:[%s5 + $0x50] sm:$0xf]
        %v2927 = vld [vmem:[%s5 + $0x54] sm:$0xf]
        %v2928 = vld [vmem:[%s5 + $0x58] sm:$0xf]
        %v2929 = vld [vmem:[%s5 + $0x5c] sm:$0xf]
        %v2930 = vld [vmem:[%s5 + $0x60] sm:$0xf]
        %v2931 = vld [vmem:[%s5 + $0x64] sm:$0xf]
        %v2932 = vld [vmem:[%s5 + $0x68] sm:$0xf]
        %v2933 = vld [vmem:[%s5 + $0x6c] sm:$0xf]
        %v2934 = vld [vmem:[%s5 + $0x70] sm:$0xf]
        %v2935 = vld [vmem:[%s5 + $0x74] sm:$0xf]
        %v2936 = vld [vmem:[%s5 + $0x78] sm:$0xf]
        %v2937 = vld [vmem:[%s5 + $0x7c] sm:$0xf]
        %v2938 = vld [vmem:[%s6] sm:$0x1]
        %v2940 = vlaneseq
        %v2941 = vshrl.u32 %v2940, 7
        %v2942 = vsub.s32 0, %v2941
        %v2943 = vrot.slane %v2938, %v2942
        %v2977 = vunpack.c.l.b16 %v2906
        %v2978 = vunpack.c.l.b16 %v2907
        %v2979 = vunpack.c.l.b16 %v2908
        %v2980 = vunpack.c.l.b16 %v2909
        %v2981 = vunpack.c.l.b16 %v2910
        %v2982 = vunpack.c.l.b16 %v2911
        %v2983 = vunpack.c.l.b16 %v2912
        %v2984 = vunpack.c.l.b16 %v2913
        %v2985 = vunpack.c.l.b16 %v2914
        %v2986 = vunpack.c.l.b16 %v2915
        %v2987 = vunpack.c.l.b16 %v2916
        %v2988 = vunpack.c.l.b16 %v2917
        %v2989 = vunpack.c.l.b16 %v2918
        %v2990 = vunpack.c.l.b16 %v2919
        %v2991 = vunpack.c.l.b16 %v2920
        %v2992 = vunpack.c.l.b16 %v2921
        %v2993 = vunpack.c.l.b16 %v2922
        %v2994 = vunpack.c.l.b16 %v2923
        %v2995 = vunpack.c.l.b16 %v2924
        %v2996 = vunpack.c.l.b16 %v2925
        %v2997 = vunpack.c.l.b16 %v2926
        %v2998 = vunpack.c.l.b16 %v2927
        %v2999 = vunpack.c.l.b16 %v2928
        %v3000 = vunpack.c.l.b16 %v2929
        %v3001 = vunpack.c.l.b16 %v2930
        %v3002 = vunpack.c.l.b16 %v2931
        %v3003 = vunpack.c.l.b16 %v2932
        %v3004 = vunpack.c.l.b16 %v2933
        %v3005 = vunpack.c.l.b16 %v2934
        %v3006 = vunpack.c.l.b16 %v2935
        %v3007 = vunpack.c.l.b16 %v2936
        %v3008 = vunpack.c.l.b16 %v2937
        %v3009 = vpack.c.b16 %v2978, %v2977
        %v3010 = vpack.c.b16 %v2980, %v2979
        %v3011 = vpack.c.b16 %v2982, %v2981
        %v3012 = vpack.c.b16 %v2984, %v2983
        %v3013 = vpack.c.b16 %v2986, %v2985
        %v3014 = vpack.c.b16 %v2988, %v2987
        %v3015 = vpack.c.b16 %v2990, %v2989
        %v3016 = vpack.c.b16 %v2992, %v2991
        %v3017 = vpack.c.b16 %v2994, %v2993
        %v3018 = vpack.c.b16 %v2996, %v2995
        %v3019 = vpack.c.b16 %v2998, %v2997
        %v3020 = vpack.c.b16 %v3000, %v2999
        %v3021 = vpack.c.b16 %v3002, %v3001
        %v3022 = vpack.c.b16 %v3004, %v3003
        %v3023 = vpack.c.b16 %v3006, %v3005
        %v3024 = vpack.c.b16 %v3008, %v3007
        %3041 = vmatprep.subr.bf16.mxu0 0
        %3042 = vmatpush1.bf16.msra.mxu0 %v3016
        %3043 = vmatprep.subr.bf16.mxu0 0
        %3044 = vmatpush1.bf16.msra.mxu0 %v3015
        %3045 = vmatprep.subr.bf16.mxu0 0
        %3046 = vmatpush1.bf16.msra.mxu0 %v3014
        %3047 = vmatprep.subr.bf16.mxu0 0
        %3048 = vmatpush1.bf16.msra.mxu0 %v3013
        %3049 = vmatprep.subr.bf16.mxu0 0
        %3050 = vmatpush1.bf16.msra.mxu0 %v3012
        %3051 = vmatprep.subr.bf16.mxu0 0
        %3052 = vmatpush1.bf16.msra.mxu0 %v3011
        %3053 = vmatprep.subr.bf16.mxu0 0
        %3054 = vmatpush1.bf16.msra.mxu0 %v3010
        %3055 = vmatprep.subr.bf16.mxu0 0
        %3056 = vmatpush1.bf16.msra.mxu0 %v3009
        %3057 = vmatprep.subr.bf16.mxu0 0
        %3058 = vmatpush2.bf16.msra.mxu0 %v3024
        %3059 = vmatprep.subr.bf16.mxu0 0
        %3060 = vmatpush2.bf16.msra.mxu0 %v3023
        %3061 = vmatprep.subr.bf16.mxu0 0
        %3062 = vmatpush2.bf16.msra.mxu0 %v3022
        %3063 = vmatprep.subr.bf16.mxu0 0
        %3064 = vmatpush2.bf16.msra.mxu0 %v3021
        %3065 = vmatprep.subr.bf16.mxu0 0
        %3066 = vmatpush2.bf16.msra.mxu0 %v3020
        %3067 = vmatprep.subr.bf16.mxu0 0
        %3068 = vmatpush2.bf16.msra.mxu0 %v3019
        %3069 = vmatprep.subr.bf16.mxu0 0
        %3070 = vmatpush2.bf16.msra.mxu0 %v3018
        %3071 = vmatprep.subr.bf16.mxu0 0
        %3072 = vmatpush2.bf16.msra.mxu0 %v3017
        %3073 = vmatprep.mubr.bf16.mxu0 %v2903
        %3074 = vmatmul.mubr.bf16.gmra.mxu0 %v2902
        %v3075 = vpop.f32.mrf.mxu0
        %v3076 = vadd.f32 %v2943, %v3075
        %v3077 = vpop.f32.mrf.mxu0
        %v3078 = vpop.f32.mrf.mxu0
        %v3079 = vadd.f32 %v2943, %v3078
        %v3080 = vpop.f32.mrf.mxu0
        %3081 = vmatprep.mubr.bf16.mxu0 %v2905
        %3082 = vmatmul.mubr.bf16.gmra.mxu0 %v2904
        %v3083 = vpop.f32.mrf.mxu0
        %v3084 = vadd.f32 %v2943, %v3083
        %v3085 = vpop.f32.mrf.mxu0
        %v3086 = vpop.f32.mrf.mxu0
        %v3087 = vpop.f32.mrf.mxu0
        %3088 = vdwg.mxu0
        %v3089 = vlaneseq
        %v3090 = vand.u32 %v3089, 127
        %vm3091 = vcmp.lt.s32.totalorder %v3090, 3
        %v3092 = vmax.f32 %v3076, 0.0
        %v3093 = vmax.f32 %v3079, 0.0
        %v3094 = vmax.f32 %v3084, 0.0
        %v3095 = vand.u32 2147483647, %v3076
        %v3096 = vand.u32 2147483647, %v3079
        %v3097 = vand.u32 2147483647, %v3084
        %v3098 = vsub.f32 0.0, %v3095
        %v3099 = vsub.f32 0.0, %v3096
        %v3100 = vsub.f32 0.0, %v3097
        %v3101 = vmul.f32 %v3098, 1.442695
        %v3102 = vpow.pop %v3101
        %v3103 = vmul.f32 %v3099, 1.442695
        %v3104 = vpow.pop %v3103
        %v3105 = vmul.f32 %v3100, 1.442695
        %v3106 = vpow.pop %v3105
        %v3107 = vadd.f32 %v3102, 1.0
        %v3108 = vlog2.pop %v3107
        %v3109 = vmul.f32 %v3108, 0.6931472
        %v3110 = vmul.f32 -0.5, %v3102
        %v3111 = vadd.f32 %v3110, 1.0
        %v3112 = vmul.f32 %v3111, %v3102
        %v3113 = vand.u32 2147483647, %v3102
        %vm3114 = vcmp.lt.f32.partialorder %v3113, 0.0004427343
        %v3115 = vsel %vm3114, %v3112, %v3109
        %v3116 = vadd.f32 %v3104, 1.0
        %v3117 = vlog2.pop %v3116
        %v3118 = vmul.f32 %v3117, 0.6931472
        %v3119 = vmul.f32 -0.5, %v3104
        %v3120 = vadd.f32 %v3119, 1.0
        %v3121 = vmul.f32 %v3120, %v3104
        %v3122 = vand.u32 2147483647, %v3104
        %vm3123 = vcmp.lt.f32.partialorder %v3122, 0.0004427343
        %v3124 = vsel %vm3123, %v3121, %v3118
        %v3125 = vadd.f32 %v3106, 1.0
        %v3126 = vlog2.pop %v3125
        %v3127 = vmul.f32 %v3126, 0.6931472
        %v3128 = vmul.f32 -0.5, %v3106
        %v3129 = vadd.f32 %v3128, 1.0
        %v3130 = vmul.f32 %v3129, %v3106
        %v3131 = vand.u32 2147483647, %v3106
        %vm3132 = vcmp.lt.f32.partialorder %v3131, 0.0004427343
        %v3133 = vsel %vm3132, %v3130, %v3127
        %v3134 = vadd.f32 %v3092, %v3115
        %v3135 = vadd.f32 %v3093, %v3124
        %v3136 = vadd.f32 %v3094, %v3133
        %v3137 = vadd.f32 %v3134, 1e-08
        %v3138 = vadd.f32 %v3135, 1e-08
        %v3139 = vadd.f32 %v3136, 1e-08
        %v3140 = vsel %vm3091, %v3076, %v3137
        %v3141 = vsel %vm3091, %v3079, %v3138
        %v3142 = vsel %vm3091, %v3084, %v3139
        %vm3143 = vcmask 48128
        %3144 = vst.msk [vmem:[%s329] sm:$0xff] %vm3143, %v3140
        %3145 = vst.msk [vmem:[%s329 + $0x8] sm:$0xff] %vm3143, %v3141
        %3146 = vst.msk [vmem:[%s329 + $0x10] sm:$0xff] %vm3143, %v3142
        %s3147 = smul.u32 3, %s22
        %p3148 = scmp.lt.s32.totalorder %s3147, 5
        %s3149 = scalar_select %p3148, %s3147, 5
        %s3150 = smul.addr %s3149, 8
        %s3151 = scalar_lea.vmem %s7, %s3150
        // Predicated region
        $region61: #{encoder_forward.1} parent=47 // pred_check
          %p3152 = pneg %p192
        $region62: #{encoder_forward.1} parent=47 // pred_check_branch
          %3154 = sbr.rel (%p3152) target = $region64
        $region63: #{encoder_forward.1} parent=47 // pred_region
          %s3155 = smul.u32 3, %s22
        $region64: #{encoder_forward.1} parent=47 // pred_fallthru
          _
      $region48: #{encoder_forward.1} parent=5 // pred_fallthru
        _
      %p3156 = scmp.le.s32.totalorder 2, %s17
      // Predicated region
      $region65: #{encoder_forward.1} parent=5 // pred_check
        %p3157 = pneg %p3156
      $region66: #{encoder_forward.1} parent=5 // pred_check_branch
        %3159 = sbr.rel (%p3157) target = $region68
      $region67: #{encoder_forward.1} parent=5 // pred_region
        %s3160 = ssub.s32 %s17, 2
        // Predicated region
        $region69: #{encoder_forward.1} parent=67 // pred_check
          %p3161 = pneg %p198
        $region70: #{encoder_forward.1} parent=67 // pred_check_branch
          %3163 = sbr.rel (%p3161) target = $region72
        $region71: #{encoder_forward.1} parent=67 // pred_region
          %s3164 = smul.u32 3, %s23
          %p3165 = scmp.lt.s32.totalorder %s3164, 5
          %s3166 = scalar_select %p3165, %s3164, 5
          %s3167 = smul.addr %s3166, 8
          %s3168 = scalar_lea.vmem %s7, %s3167
        $region72: #{encoder_forward.1} parent=67 // pred_fallthru
          _
      $region68: #{encoder_forward.1} parent=5 // pred_fallthru
        _
    $region6: #{encoder_forward.1} parent=1 // loop_footer
      %s21 = sadd.s32 1, %s17
    $region7: #{encoder_forward.1} parent=1 // loop_footer_branch
      %16 = sbr.rel target = $region3
    $region8: #{encoder_forward.1} parent=1 // loop_exit
      _
    %3169 = vsyncpa [#allocation3], 1
    %s3170 = scalar_lea.sflag [#allocation3], 1
    %3171 = vsyncpa %s3170, 1
    %3172 = vsyncpa [#allocation5], 1

</llo_original>
